<compile_context>
chip_gen: v7x
topology: tpu7x:2x2x1
jax: 0.10.0
libtpu: 0.0.40
codegen_flags: <defaults>
</compile_context>

<pallas_src>
import functools

import jax
import jax.numpy as jnp
from jax.experimental import pallas as pl
from jax.experimental.pallas import tpu as pltpu

_HIGH = jax.lax.Precision.HIGHEST


# ----------------------------------------------------------------------------
# Small data-independent helpers (tiny tensors only)
# ----------------------------------------------------------------------------
def _coord_vec(n):
    """AddCoords coordinate vector (guards n == 1)."""
    return (jnp.arange(n, dtype=jnp.float32) / max(n - 1, 1)) * 2.0 - 1.0


def make_interp_matrix(n_in, n_out):
    """Row-stochastic (n_out, n_in) bilinear matrix, align_corners=True."""
    if n_in == 1:
        return jnp.ones((n_out, 1), jnp.float32)
    i = jnp.arange(n_out, dtype=jnp.float32)
    src = i * (n_in - 1) / (n_out - 1)
    i0 = jnp.clip(jnp.floor(src).astype(jnp.int32), 0, n_in - 2)
    frac = src - i0.astype(jnp.float32)
    cols = jnp.arange(n_in)
    return ((cols[None, :] == i0[:, None]).astype(jnp.float32) * (1.0 - frac)[:, None]
            + (cols[None, :] == (i0 + 1)[:, None]).astype(jnp.float32) * frac[:, None])


def _tap_masks(rows, cols, K, pad, axis):
    """(K, 1, rows*cols) masks: 1 where the tap's source index is in range.

    axis == 0: conv along H (row index bounded by rows);
    axis == 1: conv along W (column index bounded by cols).
    The masked lanes are exactly the lanes a circular lane-roll wraps, so
    roll + mask reproduces zero padding.
    """
    L = rows * cols
    lane = jnp.arange(L, dtype=jnp.int32)
    if axis == 0:
        idx, size = lane // cols, rows
    else:
        idx, size = lane % cols, cols
    d = jnp.arange(K, dtype=jnp.int32)[:, None] - pad
    src = idx[None, :] + d
    return ((src >= 0) & (src < size)).astype(jnp.float32)[:, None, :]


def _stack_weights(w):
    """(Cout, C+1, K) conv weights -> (Cout, K*(C+1)) stacked-tap weights."""
    cout, cin1, k = w.shape
    return jnp.transpose(w, (0, 2, 1)).reshape(cout, k * cin1)


# ----------------------------------------------------------------------------
# Fused Pallas kernel: both branches, all four channel-mixing conv stages.
# Layout: channels on sublanes, flattened (rows*cols) spatial on lanes.
# ----------------------------------------------------------------------------
def _acconv_up_kernel(xg4_ref, xgh_ref,
                      ph_x_ref, pw_x_ref, pw_y_ref, ph_y_ref,
                      w_xi_ref, w_xj_ref, w_yj_ref, w_yi_ref,
                      b_xi_ref, b_xj_ref, b_yj_ref, b_yi_ref,
                      mh_out_ref, mw_out_ref, mw_mid_ref, mh_mid_ref,
                      xo_ref, ym_ref, *, K, pad, OW, W, cdt):

    def conv_stage(data, plane_ref, w_ref, b_ref, m_ref, unit):
        # Append the AddCoords coordinate plane as the last input channel.
        d = jnp.concatenate([data.astype(cdt), plane_ref[...]], axis=0)  # (C+1, L)
        L = d.shape[1]
        taps = []
        for k in range(K):
            if k == pad:
                taps.append(d)                          # centre tap: always valid
            else:
                shift = ((pad - k) * unit) % L          # lane roll (XLU slot)
                taps.append(pltpu.roll(d, shift=shift, axis=1) * m_ref[k])
        stacked = jnp.concatenate(taps, axis=0)         # (K*(C+1), L)
        acc = jnp.dot(w_ref[...], stacked, preferred_element_type=jnp.float32)
        return acc + b_ref[...]                         # (Cout, L), f32

    # ---- x branch: conv(K,1) along H then conv(1,K) along W, at (2H, 2W) ----
    x1 = conv_stage(xg4_ref[0], ph_x_ref, w_xi_ref, b_xi_ref, mh_out_ref, OW)
    x2 = conv_stage(x1, pw_x_ref, w_xj_ref, b_xj_ref, mw_out_ref, 1)
    xo_ref[0] = x2.astype(xo_ref.dtype)

    # ---- y branch: conv(1,K) along W then conv(K,1) along H, at (2H, W) -----
    # (the final W-upsample commutes with both convs and runs as an XLA
    #  epilogue on the (Cout, 2H, W) result)
    y1 = conv_stage(xgh_ref[0], pw_y_ref, w_yj_ref, b_yj_ref, mw_mid_ref, 1)
    y2 = conv_stage(y1, ph_y_ref, w_yi_ref, b_yi_ref, mh_mid_ref, W)
    ym_ref[0] = y2.astype(ym_ref.dtype)


# ----------------------------------------------------------------------------
# AC_Conv_up forward
# ----------------------------------------------------------------------------
def ac_conv_up_forward(raw, params, *, compute_dtype=jnp.float32):
    N, Cin, H, W = raw.shape
    OH, OW = 2 * H, 2 * W
    Lout, Lmid = OH * OW, OH * W
    Cout = params["w_xi"].shape[0]
    K = params["w_xi"].shape[2]
    pad = (K - 1) // 2
    cdt = compute_dtype
    out_dt = raw.dtype

    # -- separable bilinear-2x upsample of the raw input (two tiny XLA matmuls)
    UH = make_interp_matrix(H, OH)                  # (2H, H)
    UWt = make_interp_matrix(W, OW).T               # (W, 2W)
    raw32 = raw.astype(jnp.float32)
    xgh = jnp.einsum("Hh,nchw->ncHw", UH, raw32, precision=_HIGH)   # (N,Cin,2H,W)
    xg4 = jnp.einsum("nchw,wW->nchW", xgh, UWt, precision=_HIGH)    # (N,Cin,2H,2W)
    xg4_flat = xg4.reshape(N, Cin, Lout).astype(cdt)    # x-branch data
    xgh_flat = xgh.reshape(N, Cin, Lmid).astype(cdt)    # y-branch data (up_H'd)

    # -- AddCoords coordinate planes, one (1, L) plane per conv stage
    xx_out = _coord_vec(OH)
    yy_out = _coord_vec(OW)
    yy_in = _coord_vec(W)
    xx_up = UH @ _coord_vec(H)                      # bilinearly upsampled xx channel
    ph_x = jnp.broadcast_to(xx_up[:, None], (OH, OW)).reshape(1, Lout).astype(cdt)
    pw_x = jnp.broadcast_to(yy_out[None, :], (OH, OW)).reshape(1, Lout).astype(cdt)
    pw_y = jnp.broadcast_to(yy_in[None, :], (OH, W)).reshape(1, Lmid).astype(cdt)
    ph_y = jnp.broadcast_to(xx_out[:, None], (OH, W)).reshape(1, Lmid).astype(cdt)

    # -- stacked-tap weights (Cout, K*(C+1)); channel order [data..., coord]
    w_xi = _stack_weights(params["w_xi"][:, :, :, 0]).astype(cdt)   # (K,1) kernel
    w_xj = _stack_weights(params["w_xj"][:, :, 0, :]).astype(cdt)   # (1,K) kernel
    w_yj = _stack_weights(params["w_yj"][:, :, 0, :]).astype(cdt)
    w_yi = _stack_weights(params["w_yi"][:, :, :, 0]).astype(cdt)
    b_xi = params["b_xi"][:, None].astype(jnp.float32)
    b_xj = params["b_xj"][:, None].astype(jnp.float32)
    b_yj = params["b_yj"][:, None].astype(jnp.float32)
    b_yi = params["b_yi"][:, None].astype(jnp.float32)

    # -- tap validity masks (conv zero padding == roll-wrap kill)
    mh_out = _tap_masks(OH, OW, K, pad, axis=0).astype(cdt)   # conv_x_i
    mw_out = _tap_masks(OH, OW, K, pad, axis=1).astype(cdt)   # conv_x_j
    mw_mid = _tap_masks(OH, W, K, pad, axis=1).astype(cdt)    # conv_y_j
    mh_mid = _tap_masks(OH, W, K, pad, axis=0).astype(cdt)    # conv_y_i

    consts = (ph_x, pw_x, pw_y, ph_y, w_xi, w_xj, w_yj, w_yi,
              b_xi, b_xj, b_yj, b_yi, mh_out, mw_out, mw_mid, mh_mid)

    def _const_spec(a):
        if a.ndim == 2:
            imap = lambda i: (0, 0)
        else:
            imap = lambda i: (0, 0, 0)
        # Constant index map => single-buffered: no re-DMA, half the VMEM.
        return pl.BlockSpec(a.shape, imap, pipeline_mode=pl.Buffered(1))

    in_specs = [pl.BlockSpec((1, Cin, Lout), lambda i: (i, 0, 0)),
                pl.BlockSpec((1, Cin, Lmid), lambda i: (i, 0, 0))]
    in_specs += [_const_spec(a) for a in consts]
    out_specs = (pl.BlockSpec((1, Cout, Lout), lambda i: (i, 0, 0)),
                 pl.BlockSpec((1, Cout, Lmid), lambda i: (i, 0, 0)))
    out_shape = (jax.ShapeDtypeStruct((N, Cout, Lout), out_dt),
                 jax.ShapeDtypeStruct((N, Cout, Lmid), out_dt))

    # Honest cost estimate (y-branch convs run at width W, not 2W).
    flops = 2 * N * K * Cout * ((Cin + 1) + (Cout + 1)) * (Lout + Lmid) // 2
    flops = 2 * N * K * Cout * ((Cin + 1) * Lout + (Cout + 1) * Lout
                                + (Cin + 1) * Lmid + (Cout + 1) * Lmid)
    itm = jnp.dtype(cdt).itemsize
    const_bytes = sum(int(a.size) * a.dtype.itemsize for a in consts)
    bytes_accessed = (int(xg4_flat.size + xgh_flat.size) * itm + const_bytes
                      + N * Cout * (Lout + Lmid) * jnp.dtype(out_dt).itemsize)

    # VMEM budget derived from the actual buffers (double-buffered per-sample
    # I/O + single-buffered constants + in-kernel stacked-tap temporaries).
    step_bytes = Cin * (Lout + Lmid) * itm + Cout * (Lout + Lmid) * 4
    temp_bytes = K * (Cout + Cin + 2) * Lout * itm + 2 * Cout * Lout * 4
    vmem_limit = int(min(max(2 * step_bytes + const_bytes + temp_bytes + (4 << 20),
                             32 << 20), 64 << 20))

    kernel = functools.partial(_acconv_up_kernel, K=K, pad=pad, OW=OW, W=W, cdt=cdt)

    x_out_flat, y_mid_flat = pl.pallas_call(
        kernel,
        out_shape=out_shape,
        grid=(N,),
        in_specs=in_specs,
        out_specs=out_specs,
        compiler_params=pltpu.CompilerParams(
            dimension_semantics=("parallel",),
            vmem_limit_bytes=vmem_limit),
        cost_estimate=pl.CostEstimate(flops=int(flops), transcendentals=0,
                                      bytes_accessed=int(bytes_accessed)),
    )(xg4_flat, xgh_flat, *consts)

    x_out = x_out_flat.reshape(N, Cout, OH, OW)
    # y branch epilogue: the separable W-upsample, commuted past conv_y_i.
    y_mid = y_mid_flat.reshape(N, Cout, OH, W).astype(jnp.float32)
    y_out = jnp.einsum("nohw,wW->nohW", y_mid, UWt, precision=_HIGH).astype(out_dt)
    return x_out, y_out


def init_params(key, in_dim, out_dim, ksize=3):
    def conv_init(kw, kb, cout, cin, kh, kw_):
        fan_in = cin * kh * kw_
        bound = float(fan_in) ** -0.5
        w = jax.random.uniform(kw, (cout, cin, kh, kw_), jnp.float32, -bound, bound)
        b = jax.random.uniform(kb, (cout,), jnp.float32, -bound, bound)
        return w, b

    ks = jax.random.split(key, 8)
    w_xi, b_xi = conv_init(ks[0], ks[1], out_dim, in_dim + 1, ksize, 1)
    w_xj, b_xj = conv_init(ks[2], ks[3], out_dim, out_dim + 1, 1, ksize)
    w_yi, b_yi = conv_init(ks[4], ks[5], out_dim, out_dim + 1, ksize, 1)
    w_yj, b_yj = conv_init(ks[6], ks[7], out_dim, in_dim + 1, 1, ksize)
    return dict(w_xi=w_xi, b_xi=b_xi, w_xj=w_xj, b_xj=b_xj,
                w_yi=w_yi, b_yi=b_yi, w_yj=w_yj, b_yj=b_yj)


# ----------------------------------------------------------------------------
# Pure-JAX reference (f32, HIGHEST precision) for the sanity check
# ----------------------------------------------------------------------------
def addcoords(x):
    n, c, h, w = x.shape
    xx = (jnp.arange(h, dtype=jnp.float32) / max(h - 1, 1)) * 2.0 - 1.0
    yy = (jnp.arange(w, dtype=jnp.float32) / max(w - 1, 1)) * 2.0 - 1.0
    xx_ch = jnp.broadcast_to(xx[None, None, :, None], (n, 1, h, w)).astype(x.dtype)
    yy_ch = jnp.broadcast_to(yy[None, None, None, :], (n, 1, h, w)).astype(x.dtype)
    return jnp.concatenate([x, xx_ch], 1), jnp.concatenate([x, yy_ch], 1)


def reference_forward(raw, params):
    K = params["w_xi"].shape[2]
    pad = (K - 1) // 2

    def conv2d(x, w, b, ph, pw):
        out = jax.lax.conv_general_dilated(
            x, w, (1, 1), ((ph, ph), (pw, pw)),
            dimension_numbers=("NCHW", "OIHW", "NCHW"), precision=_HIGH)
        return out + b[None, :, None, None]

    def up(x):
        _, _, h, w = x.shape
        uh = make_interp_matrix(h, 2 * h)
        uw = make_interp_matrix(w, 2 * w)
        return jnp.einsum("ph,nchw,qw->ncpq", uh, x, uw, precision=_HIGH)

    x, y = addcoords(raw)
    x = conv2d(up(x), params["w_xi"], params["b_xi"], pad, 0)
    y = up(conv2d(y, params["w_yj"], params["b_yj"], 0, pad))
    x_i, x_j = addcoords(x)
    y_i, y_j = addcoords(y)
    x_out = conv2d(x_j, params["w_xj"], params["b_xj"], 0, pad)
    y_out = conv2d(y_i, params["w_yi"], params["b_yi"], pad, 0)
    return x_out, y_out


if __name__ == "__main__":
    N, in_dim, out_dim, H, W = 2, 4, 8, 16, 16
    key = jax.random.PRNGKey(0)
    k_x, k_p = jax.random.split(key)
    raw = jax.random.normal(k_x, (N, in_dim, H, W), jnp.float32)
    params = init_params(k_p, in_dim, out_dim)

    # f32 path
    x_out, y_out = jax.jit(ac_conv_up_forward)(raw, params)
    jax.block_until_ready((x_out, y_out))
    assert x_out.shape == (N, out_dim, 2 * H, 2 * W), x_out.shape
    assert y_out.shape == (N, out_dim, 2 * H, 2 * W), y_out.shape

    xr, yr = jax.jit(reference_forward)(raw, params)
    jax.block_until_ready((xr, yr))
    err_x = float(jnp.max(jnp.abs(x_out - xr)))
    err_y = float(jnp.max(jnp.abs(y_out - yr)))
    assert jnp.allclose(x_out, xr, atol=1e-3, rtol=1e-3), ("x branch mismatch", err_x)
    assert jnp.allclose(y_out, yr, atol=1e-3, rtol=1e-3), ("y branch mismatch", err_y)

    # bf16 MXU-operand path (f32 accumulation) -- review item; loose tolerance.
    fwd_bf16 = jax.jit(functools.partial(ac_conv_up_forward,
                                         compute_dtype=jnp.bfloat16))
    xb, yb = fwd_bf16(raw, params)
    jax.block_until_ready((xb, yb))
    assert jnp.allclose(xb, xr, atol=1e-1, rtol=1e-1)
    assert jnp.allclose(yb, yr, atol=1e-1, rtol=1e-1)

    print("KERNEL_OK")
</pallas_src>

<mosaic_0001>
module attributes {stable_mosaic.version = 11 : i64} {
  func.func @_acconv_up_kernel(%arg0: i32, %arg1: memref<1x4x1024xf32, #tpu.memory_space<vmem>>, %arg2: memref<1x4x512xf32, #tpu.memory_space<vmem>>, %arg3: memref<1x1024xf32, #tpu.memory_space<vmem>>, %arg4: memref<1x1024xf32, #tpu.memory_space<vmem>>, %arg5: memref<1x512xf32, #tpu.memory_space<vmem>>, %arg6: memref<1x512xf32, #tpu.memory_space<vmem>>, %arg7: memref<8x15xf32, #tpu.memory_space<vmem>>, %arg8: memref<8x27xf32, #tpu.memory_space<vmem>>, %arg9: memref<8x15xf32, #tpu.memory_space<vmem>>, %arg10: memref<8x27xf32, #tpu.memory_space<vmem>>, %arg11: memref<8x1xf32, #tpu.memory_space<vmem>>, %arg12: memref<8x1xf32, #tpu.memory_space<vmem>>, %arg13: memref<8x1xf32, #tpu.memory_space<vmem>>, %arg14: memref<8x1xf32, #tpu.memory_space<vmem>>, %arg15: memref<3x1x1024xf32, #tpu.memory_space<vmem>>, %arg16: memref<3x1x1024xf32, #tpu.memory_space<vmem>>, %arg17: memref<3x1x512xf32, #tpu.memory_space<vmem>>, %arg18: memref<3x1x512xf32, #tpu.memory_space<vmem>>, %arg19: memref<1x8x1024xf32, #tpu.memory_space<vmem>>, %arg20: memref<1x8x512xf32, #tpu.memory_space<vmem>>) attributes {dimension_semantics = [#tpu.dimension_semantics<parallel>], iteration_bounds = array<i64: 2>, scalar_prefetch = 0 : i64, scratch_operands = 0 : i64, tpu.core_type = #tpu.core_type<tc>, window_params = [{transform_indices = @transform_0, window_bounds = array<i64: 1, 4, 1024>}, {transform_indices = @transform_1, window_bounds = array<i64: 1, 4, 512>}, {pipeline_mode = #tpu.pipeline_mode<synchronous>, transform_indices = @transform_2, window_bounds = array<i64: 1, 1024>}, {pipeline_mode = #tpu.pipeline_mode<synchronous>, transform_indices = @transform_3, window_bounds = array<i64: 1, 1024>}, {pipeline_mode = #tpu.pipeline_mode<synchronous>, transform_indices = @transform_4, window_bounds = array<i64: 1, 512>}, {pipeline_mode = #tpu.pipeline_mode<synchronous>, transform_indices = @transform_5, window_bounds = array<i64: 1, 512>}, {pipeline_mode = #tpu.pipeline_mode<synchronous>, transform_indices = @transform_6, window_bounds = array<i64: 8, 15>}, {pipeline_mode = #tpu.pipeline_mode<synchronous>, transform_indices = @transform_7, window_bounds = array<i64: 8, 27>}, {pipeline_mode = #tpu.pipeline_mode<synchronous>, transform_indices = @transform_8, window_bounds = array<i64: 8, 15>}, {pipeline_mode = #tpu.pipeline_mode<synchronous>, transform_indices = @transform_9, window_bounds = array<i64: 8, 27>}, {pipeline_mode = #tpu.pipeline_mode<synchronous>, transform_indices = @transform_10, window_bounds = array<i64: 8, 1>}, {pipeline_mode = #tpu.pipeline_mode<synchronous>, transform_indices = @transform_11, window_bounds = array<i64: 8, 1>}, {pipeline_mode = #tpu.pipeline_mode<synchronous>, transform_indices = @transform_12, window_bounds = array<i64: 8, 1>}, {pipeline_mode = #tpu.pipeline_mode<synchronous>, transform_indices = @transform_13, window_bounds = array<i64: 8, 1>}, {pipeline_mode = #tpu.pipeline_mode<synchronous>, transform_indices = @transform_14, window_bounds = array<i64: 3, 1, 1024>}, {pipeline_mode = #tpu.pipeline_mode<synchronous>, transform_indices = @transform_15, window_bounds = array<i64: 3, 1, 1024>}, {pipeline_mode = #tpu.pipeline_mode<synchronous>, transform_indices = @transform_16, window_bounds = array<i64: 3, 1, 512>}, {pipeline_mode = #tpu.pipeline_mode<synchronous>, transform_indices = @transform_17, window_bounds = array<i64: 3, 1, 512>}, {transform_indices = @transform_18, window_bounds = array<i64: 1, 8, 1024>}, {transform_indices = @transform_19, window_bounds = array<i64: 1, 8, 512>}]} {
    %c0 = arith.constant 0 : index
    %c0_0 = arith.constant 0 : index
    %c0_1 = arith.constant 0 : index
    %0 = vector.load %arg1[%c0, %c0_0, %c0_1] : memref<1x4x1024xf32, #tpu.memory_space<vmem>>, vector<1x4x1024xf32>
    %1 = vector.shape_cast %0 : vector<1x4x1024xf32> to vector<4x1024xf32>
    %c0_2 = arith.constant 0 : index
    %c0_3 = arith.constant 0 : index
    %2 = vector.load %arg3[%c0_2, %c0_3] : memref<1x1024xf32, #tpu.memory_space<vmem>>, vector<1x1024xf32>
    %3 = tpu.concatenate %1, %2 in 0 : vector<4x1024xf32>, vector<1x1024xf32> -> vector<5x1024xf32>
    %c32_i32 = arith.constant 32 : i32
    %4 = tpu.dynamic_rotate %3 by %c32_i32 dim 1 : vector<5x1024xf32>, i32 -> vector<5x1024xf32>
    %c0_4 = arith.constant 0 : index
    %c0_5 = arith.constant 0 : index
    %c0_6 = arith.constant 0 : index
    %5 = vector.load %arg15[%c0_4, %c0_5, %c0_6] : memref<3x1x1024xf32, #tpu.memory_space<vmem>>, vector<1x1x1024xf32>
    %6 = vector.shape_cast %5 : vector<1x1x1024xf32> to vector<1x1024xf32>
    %7 = vector.broadcast %6 : vector<1x1024xf32> to vector<5x1024xf32>
    %8 = arith.mulf %4, %7 : vector<5x1024xf32>
    %c992_i32 = arith.constant 992 : i32
    %9 = tpu.dynamic_rotate %3 by %c992_i32 dim 1 : vector<5x1024xf32>, i32 -> vector<5x1024xf32>
    %c2 = arith.constant 2 : index
    %c0_7 = arith.constant 0 : index
    %c0_8 = arith.constant 0 : index
    %10 = vector.load %arg15[%c2, %c0_7, %c0_8] : memref<3x1x1024xf32, #tpu.memory_space<vmem>>, vector<1x1x1024xf32>
    %11 = vector.shape_cast %10 : vector<1x1x1024xf32> to vector<1x1024xf32>
    %12 = vector.broadcast %11 : vector<1x1024xf32> to vector<5x1024xf32>
    %13 = arith.mulf %9, %12 : vector<5x1024xf32>
    %14 = tpu.concatenate %8, %3, %13 in 0 : vector<5x1024xf32>, vector<5x1024xf32>, vector<5x1024xf32> -> vector<15x1024xf32>
    %c0_9 = arith.constant 0 : index
    %c0_10 = arith.constant 0 : index
    %15 = vector.load %arg7[%c0_9, %c0_10] : memref<8x15xf32, #tpu.memory_space<vmem>>, vector<8x15xf32>
    %cst = arith.constant dense<0.000000e+00> : vector<8x1024xf32>
    %16 = tpu.matmul %15, %14, %cst {dimension_numbers = #tpu.dot_dimension_numbers<[1], [0], [0], [1], [0, 0, 1, 1], [], []>} : vector<8x15xf32>, vector<15x1024xf32>, vector<8x1024xf32> -> vector<8x1024xf32>
    %c0_11 = arith.constant 0 : index
    %c0_12 = arith.constant 0 : index
    %17 = vector.load %arg11[%c0_11, %c0_12] : memref<8x1xf32, #tpu.memory_space<vmem>>, vector<8x1xf32>
    %18 = vector.broadcast %17 : vector<8x1xf32> to vector<8x1024xf32>
    %19 = arith.addf %16, %18 : vector<8x1024xf32>
    %c0_13 = arith.constant 0 : index
    %c0_14 = arith.constant 0 : index
    %20 = vector.load %arg4[%c0_13, %c0_14] : memref<1x1024xf32, #tpu.memory_space<vmem>>, vector<1x1024xf32>
    %21 = tpu.concatenate %19, %20 in 0 : vector<8x1024xf32>, vector<1x1024xf32> -> vector<9x1024xf32>
    %c1_i32 = arith.constant 1 : i32
    %22 = tpu.dynamic_rotate %21 by %c1_i32 dim 1 : vector<9x1024xf32>, i32 -> vector<9x1024xf32>
    %c0_15 = arith.constant 0 : index
    %c0_16 = arith.constant 0 : index
    %c0_17 = arith.constant 0 : index
    %23 = vector.load %arg16[%c0_15, %c0_16, %c0_17] : memref<3x1x1024xf32, #tpu.memory_space<vmem>>, vector<1x1x1024xf32>
    %24 = vector.shape_cast %23 : vector<1x1x1024xf32> to vector<1x1024xf32>
    %25 = vector.broadcast %24 : vector<1x1024xf32> to vector<9x1024xf32>
    %26 = arith.mulf %22, %25 : vector<9x1024xf32>
    %c1023_i32 = arith.constant 1023 : i32
    %27 = tpu.dynamic_rotate %21 by %c1023_i32 dim 1 : vector<9x1024xf32>, i32 -> vector<9x1024xf32>
    %c2_18 = arith.constant 2 : index
    %c0_19 = arith.constant 0 : index
    %c0_20 = arith.constant 0 : index
    %28 = vector.load %arg16[%c2_18, %c0_19, %c0_20] : memref<3x1x1024xf32, #tpu.memory_space<vmem>>, vector<1x1x1024xf32>
    %29 = vector.shape_cast %28 : vector<1x1x1024xf32> to vector<1x1024xf32>
    %30 = vector.broadcast %29 : vector<1x1024xf32> to vector<9x1024xf32>
    %31 = arith.mulf %27, %30 : vector<9x1024xf32>
    %32 = tpu.concatenate %26, %21, %31 in 0 : vector<9x1024xf32>, vector<9x1024xf32>, vector<9x1024xf32> -> vector<27x1024xf32>
    %c0_21 = arith.constant 0 : index
    %c0_22 = arith.constant 0 : index
    %33 = vector.load %arg8[%c0_21, %c0_22] : memref<8x27xf32, #tpu.memory_space<vmem>>, vector<8x27xf32>
    %cst_23 = arith.constant dense<0.000000e+00> : vector<8x1024xf32>
    %34 = tpu.matmul %33, %32, %cst_23 {dimension_numbers = #tpu.dot_dimension_numbers<[1], [0], [0], [1], [0, 0, 1, 1], [], []>} : vector<8x27xf32>, vector<27x1024xf32>, vector<8x1024xf32> -> vector<8x1024xf32>
    %c0_24 = arith.constant 0 : index
    %c0_25 = arith.constant 0 : index
    %35 = vector.load %arg12[%c0_24, %c0_25] : memref<8x1xf32, #tpu.memory_space<vmem>>, vector<8x1xf32>
    %36 = vector.broadcast %35 : vector<8x1xf32> to vector<8x1024xf32>
    %37 = arith.addf %34, %36 : vector<8x1024xf32>
    %c0_26 = arith.constant 0 : index
    %c0_27 = arith.constant 0 : index
    %c0_28 = arith.constant 0 : index
    %38 = vector.load %arg19[%c0_26, %c0_27, %c0_28] : memref<1x8x1024xf32, #tpu.memory_space<vmem>>, vector<1x8x1024xf32>
    %39 = vector.shape_cast %38 : vector<1x8x1024xf32> to vector<8x1024xf32>
    %40 = vector.shape_cast %37 : vector<8x1024xf32> to vector<1x8x1024xf32>
    tpu.vector_store %arg19[%c0_26, %c0_27, %c0_28], %40 {strides = array<i32>} : memref<1x8x1024xf32, #tpu.memory_space<vmem>>, vector<1x8x1024xf32>,
    %c0_29 = arith.constant 0 : index
    %c0_30 = arith.constant 0 : index
    %c0_31 = arith.constant 0 : index
    %41 = vector.load %arg2[%c0_29, %c0_30, %c0_31] : memref<1x4x512xf32, #tpu.memory_space<vmem>>, vector<1x4x512xf32>
    %42 = vector.shape_cast %41 : vector<1x4x512xf32> to vector<4x512xf32>
    %c0_32 = arith.constant 0 : index
    %c0_33 = arith.constant 0 : index
    %43 = vector.load %arg5[%c0_32, %c0_33] : memref<1x512xf32, #tpu.memory_space<vmem>>, vector<1x512xf32>
    %44 = tpu.concatenate %42, %43 in 0 : vector<4x512xf32>, vector<1x512xf32> -> vector<5x512xf32>
    %c1_i32_34 = arith.constant 1 : i32
    %45 = tpu.dynamic_rotate %44 by %c1_i32_34 dim 1 : vector<5x512xf32>, i32 -> vector<5x512xf32>
    %c0_35 = arith.constant 0 : index
    %c0_36 = arith.constant 0 : index
    %c0_37 = arith.constant 0 : index
    %46 = vector.load %arg17[%c0_35, %c0_36, %c0_37] : memref<3x1x512xf32, #tpu.memory_space<vmem>>, vector<1x1x512xf32>
    %47 = vector.shape_cast %46 : vector<1x1x512xf32> to vector<1x512xf32>
    %48 = vector.broadcast %47 : vector<1x512xf32> to vector<5x512xf32>
    %49 = arith.mulf %45, %48 : vector<5x512xf32>
    %c511_i32 = arith.constant 511 : i32
    %50 = tpu.dynamic_rotate %44 by %c511_i32 dim 1 : vector<5x512xf32>, i32 -> vector<5x512xf32>
    %c2_38 = arith.constant 2 : index
    %c0_39 = arith.constant 0 : index
    %c0_40 = arith.constant 0 : index
    %51 = vector.load %arg17[%c2_38, %c0_39, %c0_40] : memref<3x1x512xf32, #tpu.memory_space<vmem>>, vector<1x1x512xf32>
    %52 = vector.shape_cast %51 : vector<1x1x512xf32> to vector<1x512xf32>
    %53 = vector.broadcast %52 : vector<1x512xf32> to vector<5x512xf32>
    %54 = arith.mulf %50, %53 : vector<5x512xf32>
    %55 = tpu.concatenate %49, %44, %54 in 0 : vector<5x512xf32>, vector<5x512xf32>, vector<5x512xf32> -> vector<15x512xf32>
    %c0_41 = arith.constant 0 : index
    %c0_42 = arith.constant 0 : index
    %56 = vector.load %arg9[%c0_41, %c0_42] : memref<8x15xf32, #tpu.memory_space<vmem>>, vector<8x15xf32>
    %cst_43 = arith.constant dense<0.000000e+00> : vector<8x512xf32>
    %57 = tpu.matmul %56, %55, %cst_43 {dimension_numbers = #tpu.dot_dimension_numbers<[1], [0], [0], [1], [0, 0, 1, 1], [], []>} : vector<8x15xf32>, vector<15x512xf32>, vector<8x512xf32> -> vector<8x512xf32>
    %c0_44 = arith.constant 0 : index
    %c0_45 = arith.constant 0 : index
    %58 = vector.load %arg13[%c0_44, %c0_45] : memref<8x1xf32, #tpu.memory_space<vmem>>, vector<8x1xf32>
    %59 = vector.broadcast %58 : vector<8x1xf32> to vector<8x512xf32>
    %60 = arith.addf %57, %59 : vector<8x512xf32>
    %c0_46 = arith.constant 0 : index
    %c0_47 = arith.constant 0 : index
    %61 = vector.load %arg6[%c0_46, %c0_47] : memref<1x512xf32, #tpu.memory_space<vmem>>, vector<1x512xf32>
    %62 = tpu.concatenate %60, %61 in 0 : vector<8x512xf32>, vector<1x512xf32> -> vector<9x512xf32>
    %c16_i32 = arith.constant 16 : i32
    %63 = tpu.dynamic_rotate %62 by %c16_i32 dim 1 : vector<9x512xf32>, i32 -> vector<9x512xf32>
    %c0_48 = arith.constant 0 : index
    %c0_49 = arith.constant 0 : index
    %c0_50 = arith.constant 0 : index
    %64 = vector.load %arg18[%c0_48, %c0_49, %c0_50] : memref<3x1x512xf32, #tpu.memory_space<vmem>>, vector<1x1x512xf32>
    %65 = vector.shape_cast %64 : vector<1x1x512xf32> to vector<1x512xf32>
    %66 = vector.broadcast %65 : vector<1x512xf32> to vector<9x512xf32>
    %67 = arith.mulf %63, %66 : vector<9x512xf32>
    %c496_i32 = arith.constant 496 : i32
    %68 = tpu.dynamic_rotate %62 by %c496_i32 dim 1 : vector<9x512xf32>, i32 -> vector<9x512xf32>
    %c2_51 = arith.constant 2 : index
    %c0_52 = arith.constant 0 : index
    %c0_53 = arith.constant 0 : index
    %69 = vector.load %arg18[%c2_51, %c0_52, %c0_53] : memref<3x1x512xf32, #tpu.memory_space<vmem>>, vector<1x1x512xf32>
    %70 = vector.shape_cast %69 : vector<1x1x512xf32> to vector<1x512xf32>
    %71 = vector.broadcast %70 : vector<1x512xf32> to vector<9x512xf32>
    %72 = arith.mulf %68, %71 : vector<9x512xf32>
    %73 = tpu.concatenate %67, %62, %72 in 0 : vector<9x512xf32>, vector<9x512xf32>, vector<9x512xf32> -> vector<27x512xf32>
    %c0_54 = arith.constant 0 : index
    %c0_55 = arith.constant 0 : index
    %74 = vector.load %arg10[%c0_54, %c0_55] : memref<8x27xf32, #tpu.memory_space<vmem>>, vector<8x27xf32>
    %cst_56 = arith.constant dense<0.000000e+00> : vector<8x512xf32>
    %75 = tpu.matmul %74, %73, %cst_56 {dimension_numbers = #tpu.dot_dimension_numbers<[1], [0], [0], [1], [0, 0, 1, 1], [], []>} : vector<8x27xf32>, vector<27x512xf32>, vector<8x512xf32> -> vector<8x512xf32>
    %c0_57 = arith.constant 0 : index
    %c0_58 = arith.constant 0 : index
    %76 = vector.load %arg14[%c0_57, %c0_58] : memref<8x1xf32, #tpu.memory_space<vmem>>, vector<8x1xf32>
    %77 = vector.broadcast %76 : vector<8x1xf32> to vector<8x512xf32>
    %78 = arith.addf %75, %77 : vector<8x512xf32>
    %c0_59 = arith.constant 0 : index
    %c0_60 = arith.constant 0 : index
    %c0_61 = arith.constant 0 : index
    %79 = vector.load %arg20[%c0_59, %c0_60, %c0_61] : memref<1x8x512xf32, #tpu.memory_space<vmem>>, vector<1x8x512xf32>
    %80 = vector.shape_cast %79 : vector<1x8x512xf32> to vector<8x512xf32>
    %81 = vector.shape_cast %78 : vector<8x512xf32> to vector<1x8x512xf32>
    tpu.vector_store %arg20[%c0_59, %c0_60, %c0_61], %81 {strides = array<i32>} : memref<1x8x512xf32, #tpu.memory_space<vmem>>, vector<1x8x512xf32>,
    return
  }
  func.func @transform_0(%arg0: i32) -> (i32, i32, i32) {
    %c0_i32 = arith.constant 0 : i32
    %c0_i32_0 = arith.constant 0 : i32
    %c0_i32_1 = arith.constant 0 : i32
    return %arg0, %c0_i32, %c0_i32_0 : i32, i32, i32
  }
  func.func @transform_1(%arg0: i32) -> (i32, i32, i32) {
    %c0_i32 = arith.constant 0 : i32
    %c0_i32_0 = arith.constant 0 : i32
    %c0_i32_1 = arith.constant 0 : i32
    return %arg0, %c0_i32, %c0_i32_0 : i32, i32, i32
  }
  func.func @transform_2(%arg0: i32) -> (i32, i32) {
    %c0_i32 = arith.constant 0 : i32
    %c0_i32_0 = arith.constant 0 : i32
    %c0_i32_1 = arith.constant 0 : i32
    return %c0_i32, %c0_i32_0 : i32, i32
  }
  func.func @transform_3(%arg0: i32) -> (i32, i32) {
    %c0_i32 = arith.constant 0 : i32
    %c0_i32_0 = arith.constant 0 : i32
    %c0_i32_1 = arith.constant 0 : i32
    return %c0_i32, %c0_i32_0 : i32, i32
  }
  func.func @transform_4(%arg0: i32) -> (i32, i32) {
    %c0_i32 = arith.constant 0 : i32
    %c0_i32_0 = arith.constant 0 : i32
    %c0_i32_1 = arith.constant 0 : i32
    return %c0_i32, %c0_i32_0 : i32, i32
  }
  func.func @transform_5(%arg0: i32) -> (i32, i32) {
    %c0_i32 = arith.constant 0 : i32
    %c0_i32_0 = arith.constant 0 : i32
    %c0_i32_1 = arith.constant 0 : i32
    return %c0_i32, %c0_i32_0 : i32, i32
  }
  func.func @transform_6(%arg0: i32) -> (i32, i32) {
    %c0_i32 = arith.constant 0 : i32
    %c0_i32_0 = arith.constant 0 : i32
    %c0_i32_1 = arith.constant 0 : i32
    return %c0_i32, %c0_i32_0 : i32, i32
  }
  func.func @transform_7(%arg0: i32) -> (i32, i32) {
    %c0_i32 = arith.constant 0 : i32
    %c0_i32_0 = arith.constant 0 : i32
    %c0_i32_1 = arith.constant 0 : i32
    return %c0_i32, %c0_i32_0 : i32, i32
  }
  func.func @transform_8(%arg0: i32) -> (i32, i32) {
    %c0_i32 = arith.constant 0 : i32
    %c0_i32_0 = arith.constant 0 : i32
    %c0_i32_1 = arith.constant 0 : i32
    return %c0_i32, %c0_i32_0 : i32, i32
  }
  func.func @transform_9(%arg0: i32) -> (i32, i32) {
    %c0_i32 = arith.constant 0 : i32
    %c0_i32_0 = arith.constant 0 : i32
    %c0_i32_1 = arith.constant 0 : i32
    return %c0_i32, %c0_i32_0 : i32, i32
  }
  func.func @transform_10(%arg0: i32) -> (i32, i32) {
    %c0_i32 = arith.constant 0 : i32
    %c0_i32_0 = arith.constant 0 : i32
    %c0_i32_1 = arith.constant 0 : i32
    return %c0_i32, %c0_i32_0 : i32, i32
  }
  func.func @transform_11(%arg0: i32) -> (i32, i32) {
    %c0_i32 = arith.constant 0 : i32
    %c0_i32_0 = arith.constant 0 : i32
    %c0_i32_1 = arith.constant 0 : i32
    return %c0_i32, %c0_i32_0 : i32, i32
  }
  func.func @transform_12(%arg0: i32) -> (i32, i32) {
    %c0_i32 = arith.constant 0 : i32
    %c0_i32_0 = arith.constant 0 : i32
    %c0_i32_1 = arith.constant 0 : i32
    return %c0_i32, %c0_i32_0 : i32, i32
  }
  func.func @transform_13(%arg0: i32) -> (i32, i32) {
    %c0_i32 = arith.constant 0 : i32
    %c0_i32_0 = arith.constant 0 : i32
    %c0_i32_1 = arith.constant 0 : i32
    return %c0_i32, %c0_i32_0 : i32, i32
  }
  func.func @transform_14(%arg0: i32) -> (i32, i32, i32) {
    %c0_i32 = arith.constant 0 : i32
    %c0_i32_0 = arith.constant 0 : i32
    %c0_i32_1 = arith.constant 0 : i32
    %c0_i32_2 = arith.constant 0 : i32
    return %c0_i32, %c0_i32_0, %c0_i32_1 : i32, i32, i32
  }
  func.func @transform_15(%arg0: i32) -> (i32, i32, i32) {
    %c0_i32 = arith.constant 0 : i32
    %c0_i32_0 = arith.constant 0 : i32
    %c0_i32_1 = arith.constant 0 : i32
    %c0_i32_2 = arith.constant 0 : i32
    return %c0_i32, %c0_i32_0, %c0_i32_1 : i32, i32, i32
  }
  func.func @transform_16(%arg0: i32) -> (i32, i32, i32) {
    %c0_i32 = arith.constant 0 : i32
    %c0_i32_0 = arith.constant 0 : i32
    %c0_i32_1 = arith.constant 0 : i32
    %c0_i32_2 = arith.constant 0 : i32
    return %c0_i32, %c0_i32_0, %c0_i32_1 : i32, i32, i32
  }
  func.func @transform_17(%arg0: i32) -> (i32, i32, i32) {
    %c0_i32 = arith.constant 0 : i32
    %c0_i32_0 = arith.constant 0 : i32
    %c0_i32_1 = arith.constant 0 : i32
    %c0_i32_2 = arith.constant 0 : i32
    return %c0_i32, %c0_i32_0, %c0_i32_1 : i32, i32, i32
  }
  func.func @transform_18(%arg0: i32) -> (i32, i32, i32) {
    %c0_i32 = arith.constant 0 : i32
    %c0_i32_0 = arith.constant 0 : i32
    %c0_i32_1 = arith.constant 0 : i32
    return %arg0, %c0_i32, %c0_i32_0 : i32, i32, i32
  }
  func.func @transform_19(%arg0: i32) -> (i32, i32, i32) {
    %c0_i32 = arith.constant 0 : i32
    %c0_i32_0 = arith.constant 0 : i32
    %c0_i32_1 = arith.constant 0 : i32
    return %arg0, %c0_i32, %c0_i32_0 : i32, i32, i32
  }
}

</mosaic_0001>

<llo_original>
// kernel: ac_conv_up_forward.1
$region0: #{ac_conv_up_forward.1}
  #allocation0 [shape = 'u32[]', space=smem, size = 0x4, offset = 0x4, fixed_abs, tag = 'smem constant byte address 0x4 - core index']
  #allocation1 [shape = 'u32[144,128]{1,0:T(1,128)}', space=vmem, size = 0x12000, scoped, tag = 'internal scratch']
  %s0 = inlined_call_operand.vmem [shape: f32[2,4,1024], index: 0, kind: input, shape index: {}]
  %s1 = inlined_call_operand.vmem [shape: f32[2,4,512], index: 1, kind: input, shape index: {}]
  %s2 = inlined_call_operand.vmem [shape: f32[1,1024], index: 2, kind: input, shape index: {}]
  %s3 = inlined_call_operand.vmem [shape: f32[1,1024], index: 3, kind: input, shape index: {}]
  %s4 = inlined_call_operand.vmem [shape: f32[1,512], index: 4, kind: input, shape index: {}]
  %s5 = inlined_call_operand.vmem [shape: f32[1,512], index: 5, kind: input, shape index: {}]
  %s6 = inlined_call_operand.vmem [shape: f32[8,15], index: 6, kind: input, shape index: {}]
  %s7 = inlined_call_operand.vmem [shape: f32[8,27], index: 7, kind: input, shape index: {}]
  %s8 = inlined_call_operand.vmem [shape: f32[8,15], index: 8, kind: input, shape index: {}]
  %s9 = inlined_call_operand.vmem [shape: f32[8,27], index: 9, kind: input, shape index: {}]
  %s10 = inlined_call_operand.vmem [shape: f32[8,1], index: 10, kind: input, shape index: {}]
  %s11 = inlined_call_operand.vmem [shape: f32[8,1], index: 11, kind: input, shape index: {}]
  %s12 = inlined_call_operand.vmem [shape: f32[8,1], index: 12, kind: input, shape index: {}]
  %s13 = inlined_call_operand.vmem [shape: f32[8,1], index: 13, kind: input, shape index: {}]
  %s14 = inlined_call_operand.vmem [shape: f32[3,1,1024], index: 14, kind: input, shape index: {}]
  %s15 = inlined_call_operand.vmem [shape: f32[3,1,1024], index: 15, kind: input, shape index: {}]
  %s16 = inlined_call_operand.vmem [shape: f32[3,1,512], index: 16, kind: input, shape index: {}]
  %s17 = inlined_call_operand.vmem [shape: f32[3,1,512], index: 17, kind: input, shape index: {}]
  %s18 = inlined_call_operand.vmem [shape: f32[2,8,1024], index: 18, kind: output, shape index: {0}]
  %s19 = inlined_call_operand.vmem [shape: f32[2,8,512], index: 19, kind: output, shape index: {1}]
  %20 = xla_tuple %s18, %s19
  %s21 = sld [smem:[#allocation0]]
  $region113: #{ac_conv_up_forward.1} parent=0
    _
  %s23 = ssub.s32 1, %s21
  %s24 = scalar_select 0, %s23, %s21
  loop: start=0, step=1, limit=4
  $region2: #{ac_conv_up_forward.1} parent=0 // loop_pre_header
    _
  $region3: #{ac_conv_up_forward.1} parent=0 // loop_header
    %s26 = sphi 0, %s30
    %p27 = scmp.ge.s32.totalorder %s26, 4
    %s36 = sphi 0, %s38
    %s39 = sphi 0, %s36
    %s40 = sphi 0, %s39
    %s56 = sphi 0, %s40
    %s62 = sphi 0, %s64
    %s65 = sphi 0, %s62
    %s66 = sphi 0, %s65
    %s82 = sphi 0, %s66
    %s86 = sphi 0, %s86
    %s88 = sphi 0, %s86
    %s89 = sphi 0, %s88
    %s103 = sphi 0, %s89
    %s107 = sphi 0, %s107
    %s109 = sphi 0, %s107
    %s110 = sphi 0, %s109
    %s124 = sphi 0, %s110
    %s128 = sphi 0, %s128
    %s130 = sphi 0, %s128
    %s131 = sphi 0, %s130
    %s145 = sphi 0, %s131
    %s149 = sphi 0, %s149
    %s151 = sphi 0, %s149
    %s152 = sphi 0, %s151
    %s166 = sphi 0, %s152
    %s170 = sphi 0, %s170
    %s172 = sphi 0, %s170
    %s173 = sphi 0, %s172
    %s187 = sphi 0, %s173
    %s191 = sphi 0, %s191
    %s193 = sphi 0, %s191
    %s194 = sphi 0, %s193
    %s208 = sphi 0, %s194
    %s212 = sphi 0, %s212
    %s214 = sphi 0, %s212
    %s215 = sphi 0, %s214
    %s229 = sphi 0, %s215
    %s233 = sphi 0, %s233
    %s235 = sphi 0, %s233
    %s236 = sphi 0, %s235
    %s250 = sphi 0, %s236
    %s254 = sphi 0, %s254
    %s256 = sphi 0, %s254
    %s257 = sphi 0, %s256
    %s271 = sphi 0, %s257
    %s275 = sphi 0, %s275
    %s277 = sphi 0, %s275
    %s278 = sphi 0, %s277
    %s292 = sphi 0, %s278
    %s296 = sphi 0, %s296
    %s298 = sphi 0, %s296
    %s299 = sphi 0, %s298
    %s313 = sphi 0, %s299
    %s317 = sphi 0, %s317
    %s319 = sphi 0, %s317
    %s320 = sphi 0, %s319
    %s334 = sphi 0, %s320
    %s338 = sphi 0, %s338
    %s340 = sphi 0, %s338
    %s341 = sphi 0, %s340
    %s355 = sphi 0, %s341
    %s359 = sphi 0, %s359
    %s361 = sphi 0, %s359
    %s362 = sphi 0, %s361
    %s376 = sphi 0, %s362
    %s380 = sphi 0, %s380
    %s382 = sphi 0, %s380
    %s383 = sphi 0, %s382
    %s397 = sphi 0, %s383
    %s401 = sphi 0, %s401
    %s403 = sphi 0, %s401
    %s404 = sphi 0, %s403
    %s418 = sphi 0, %s404
    %s424 = sphi 0, %s426
    %s427 = sphi 0, %s424
    %s428 = sphi 0, %s427
    %s444 = sphi 0, %s428
    %s450 = sphi 0, %s452
    %s453 = sphi 0, %s450
    %s454 = sphi 0, %s453
    %s470 = sphi 0, %s454
  $region4: #{ac_conv_up_forward.1} parent=0 // loop_header_branch
    %29 = sbr.rel (%p27) target = $region8
  $region5: #{ac_conv_up_forward.1} parent=0 // loop_body
    %s31 = ssub.s32 %s26, 1
    %s32 = ssub.s32 %s26, 2
    %s33 = sadd.s32 %s26, 1
    %s34 = ssub.s32 %s26, %s33
    %p35 = scmp.eq.s32.totalorder %s34, 0
    %s37 = sadd.s32 %s36, 1
    %s38 = scalar_select %p35, %s36, %s37
    %p41 = pneg %p35
    %p42 = scmp.eq.s32.totalorder %s26, 1
    %p43 = por %p41, %p42
    %p44 = scmp.ne.s32.totalorder %s36, %s39
    %p45 = scmp.eq.s32.totalorder %s26, 0
    %p46 = por %p44, %p45
    %p47 = scmp.ne.s32.totalorder %s36, %s39
    %p48 = scmp.eq.s32.totalorder %s31, 1
    %p49 = por %p47, %p48
    %p50 = scmp.ne.s32.totalorder %s39, %s40
    %p51 = scmp.eq.s32.totalorder %s31, 0
    %p52 = por %p50, %p51
    %p53 = scmp.ne.s32.totalorder %s39, %s40
    %p54 = scmp.eq.s32.totalorder %s32, 1
    %p55 = por %p53, %p54
    %p57 = scmp.ne.s32.totalorder %s40, %s56
    %p58 = scmp.eq.s32.totalorder %s32, 0
    %p59 = por %p57, %p58
    %s60 = ssub.s32 %s26, %s33
    %p61 = scmp.eq.s32.totalorder %s60, 0
    %s63 = sadd.s32 %s62, 1
    %s64 = scalar_select %p61, %s62, %s63
    %p67 = pneg %p61
    %p68 = scmp.eq.s32.totalorder %s26, 1
    %p69 = por %p67, %p68
    %p70 = scmp.ne.s32.totalorder %s62, %s65
    %p71 = scmp.eq.s32.totalorder %s26, 0
    %p72 = por %p70, %p71
    %p73 = scmp.ne.s32.totalorder %s62, %s65
    %p74 = scmp.eq.s32.totalorder %s31, 1
    %p75 = por %p73, %p74
    %p76 = scmp.ne.s32.totalorder %s65, %s66
    %p77 = scmp.eq.s32.totalorder %s31, 0
    %p78 = por %p76, %p77
    %p79 = scmp.ne.s32.totalorder %s65, %s66
    %p80 = scmp.eq.s32.totalorder %s32, 1
    %p81 = por %p79, %p80
    %p83 = scmp.ne.s32.totalorder %s66, %s82
    %p84 = scmp.eq.s32.totalorder %s32, 0
    %p85 = por %p83, %p84
    %s87 = sadd.s32 %s86, 1
    %p90 = scmp.eq.s32.totalorder %s26, 1
    %p91 = scmp.ne.s32.totalorder %s86, %s88
    %p92 = scmp.eq.s32.totalorder %s26, 0
    %p93 = por %p91, %p92
    %p94 = scmp.ne.s32.totalorder %s86, %s88
    %p95 = scmp.eq.s32.totalorder %s31, 1
    %p96 = por %p94, %p95
    %p97 = scmp.ne.s32.totalorder %s88, %s89
    %p98 = scmp.eq.s32.totalorder %s31, 0
    %p99 = por %p97, %p98
    %p100 = scmp.ne.s32.totalorder %s88, %s89
    %p101 = scmp.eq.s32.totalorder %s32, 1
    %p102 = por %p100, %p101
    %p104 = scmp.ne.s32.totalorder %s89, %s103
    %p105 = scmp.eq.s32.totalorder %s32, 0
    %p106 = por %p104, %p105
    %s108 = sadd.s32 %s107, 1
    %p111 = scmp.eq.s32.totalorder %s26, 1
    %p112 = scmp.ne.s32.totalorder %s107, %s109
    %p113 = scmp.eq.s32.totalorder %s26, 0
    %p114 = por %p112, %p113
    %p115 = scmp.ne.s32.totalorder %s107, %s109
    %p116 = scmp.eq.s32.totalorder %s31, 1
    %p117 = por %p115, %p116
    %p118 = scmp.ne.s32.totalorder %s109, %s110
    %p119 = scmp.eq.s32.totalorder %s31, 0
    %p120 = por %p118, %p119
    %p121 = scmp.ne.s32.totalorder %s109, %s110
    %p122 = scmp.eq.s32.totalorder %s32, 1
    %p123 = por %p121, %p122
    %p125 = scmp.ne.s32.totalorder %s110, %s124
    %p126 = scmp.eq.s32.totalorder %s32, 0
    %p127 = por %p125, %p126
    %s129 = sadd.s32 %s128, 1
    %p132 = scmp.eq.s32.totalorder %s26, 1
    %p133 = scmp.ne.s32.totalorder %s128, %s130
    %p134 = scmp.eq.s32.totalorder %s26, 0
    %p135 = por %p133, %p134
    %p136 = scmp.ne.s32.totalorder %s128, %s130
    %p137 = scmp.eq.s32.totalorder %s31, 1
    %p138 = por %p136, %p137
    %p139 = scmp.ne.s32.totalorder %s130, %s131
    %p140 = scmp.eq.s32.totalorder %s31, 0
    %p141 = por %p139, %p140
    %p142 = scmp.ne.s32.totalorder %s130, %s131
    %p143 = scmp.eq.s32.totalorder %s32, 1
    %p144 = por %p142, %p143
    %p146 = scmp.ne.s32.totalorder %s131, %s145
    %p147 = scmp.eq.s32.totalorder %s32, 0
    %p148 = por %p146, %p147
    %s150 = sadd.s32 %s149, 1
    %p153 = scmp.eq.s32.totalorder %s26, 1
    %p154 = scmp.ne.s32.totalorder %s149, %s151
    %p155 = scmp.eq.s32.totalorder %s26, 0
    %p156 = por %p154, %p155
    %p157 = scmp.ne.s32.totalorder %s149, %s151
    %p158 = scmp.eq.s32.totalorder %s31, 1
    %p159 = por %p157, %p158
    %p160 = scmp.ne.s32.totalorder %s151, %s152
    %p161 = scmp.eq.s32.totalorder %s31, 0
    %p162 = por %p160, %p161
    %p163 = scmp.ne.s32.totalorder %s151, %s152
    %p164 = scmp.eq.s32.totalorder %s32, 1
    %p165 = por %p163, %p164
    %p167 = scmp.ne.s32.totalorder %s152, %s166
    %p168 = scmp.eq.s32.totalorder %s32, 0
    %p169 = por %p167, %p168
    %s171 = sadd.s32 %s170, 1
    %p174 = scmp.eq.s32.totalorder %s26, 1
    %p175 = scmp.ne.s32.totalorder %s170, %s172
    %p176 = scmp.eq.s32.totalorder %s26, 0
    %p177 = por %p175, %p176
    %p178 = scmp.ne.s32.totalorder %s170, %s172
    %p179 = scmp.eq.s32.totalorder %s31, 1
    %p180 = por %p178, %p179
    %p181 = scmp.ne.s32.totalorder %s172, %s173
    %p182 = scmp.eq.s32.totalorder %s31, 0
    %p183 = por %p181, %p182
    %p184 = scmp.ne.s32.totalorder %s172, %s173
    %p185 = scmp.eq.s32.totalorder %s32, 1
    %p186 = por %p184, %p185
    %p188 = scmp.ne.s32.totalorder %s173, %s187
    %p189 = scmp.eq.s32.totalorder %s32, 0
    %p190 = por %p188, %p189
    %s192 = sadd.s32 %s191, 1
    %p195 = scmp.eq.s32.totalorder %s26, 1
    %p196 = scmp.ne.s32.totalorder %s191, %s193
    %p197 = scmp.eq.s32.totalorder %s26, 0
    %p198 = por %p196, %p197
    %p199 = scmp.ne.s32.totalorder %s191, %s193
    %p200 = scmp.eq.s32.totalorder %s31, 1
    %p201 = por %p199, %p200
    %p202 = scmp.ne.s32.totalorder %s193, %s194
    %p203 = scmp.eq.s32.totalorder %s31, 0
    %p204 = por %p202, %p203
    %p205 = scmp.ne.s32.totalorder %s193, %s194
    %p206 = scmp.eq.s32.totalorder %s32, 1
    %p207 = por %p205, %p206
    %p209 = scmp.ne.s32.totalorder %s194, %s208
    %p210 = scmp.eq.s32.totalorder %s32, 0
    %p211 = por %p209, %p210
    %s213 = sadd.s32 %s212, 1
    %p216 = scmp.eq.s32.totalorder %s26, 1
    %p217 = scmp.ne.s32.totalorder %s212, %s214
    %p218 = scmp.eq.s32.totalorder %s26, 0
    %p219 = por %p217, %p218
    %p220 = scmp.ne.s32.totalorder %s212, %s214
    %p221 = scmp.eq.s32.totalorder %s31, 1
    %p222 = por %p220, %p221
    %p223 = scmp.ne.s32.totalorder %s214, %s215
    %p224 = scmp.eq.s32.totalorder %s31, 0
    %p225 = por %p223, %p224
    %p226 = scmp.ne.s32.totalorder %s214, %s215
    %p227 = scmp.eq.s32.totalorder %s32, 1
    %p228 = por %p226, %p227
    %p230 = scmp.ne.s32.totalorder %s215, %s229
    %p231 = scmp.eq.s32.totalorder %s32, 0
    %p232 = por %p230, %p231
    %s234 = sadd.s32 %s233, 1
    %p237 = scmp.eq.s32.totalorder %s26, 1
    %p238 = scmp.ne.s32.totalorder %s233, %s235
    %p239 = scmp.eq.s32.totalorder %s26, 0
    %p240 = por %p238, %p239
    %p241 = scmp.ne.s32.totalorder %s233, %s235
    %p242 = scmp.eq.s32.totalorder %s31, 1
    %p243 = por %p241, %p242
    %p244 = scmp.ne.s32.totalorder %s235, %s236
    %p245 = scmp.eq.s32.totalorder %s31, 0
    %p246 = por %p244, %p245
    %p247 = scmp.ne.s32.totalorder %s235, %s236
    %p248 = scmp.eq.s32.totalorder %s32, 1
    %p249 = por %p247, %p248
    %p251 = scmp.ne.s32.totalorder %s236, %s250
    %p252 = scmp.eq.s32.totalorder %s32, 0
    %p253 = por %p251, %p252
    %s255 = sadd.s32 %s254, 1
    %p258 = scmp.eq.s32.totalorder %s26, 1
    %p259 = scmp.ne.s32.totalorder %s254, %s256
    %p260 = scmp.eq.s32.totalorder %s26, 0
    %p261 = por %p259, %p260
    %p262 = scmp.ne.s32.totalorder %s254, %s256
    %p263 = scmp.eq.s32.totalorder %s31, 1
    %p264 = por %p262, %p263
    %p265 = scmp.ne.s32.totalorder %s256, %s257
    %p266 = scmp.eq.s32.totalorder %s31, 0
    %p267 = por %p265, %p266
    %p268 = scmp.ne.s32.totalorder %s256, %s257
    %p269 = scmp.eq.s32.totalorder %s32, 1
    %p270 = por %p268, %p269
    %p272 = scmp.ne.s32.totalorder %s257, %s271
    %p273 = scmp.eq.s32.totalorder %s32, 0
    %p274 = por %p272, %p273
    %s276 = sadd.s32 %s275, 1
    %p279 = scmp.eq.s32.totalorder %s26, 1
    %p280 = scmp.ne.s32.totalorder %s275, %s277
    %p281 = scmp.eq.s32.totalorder %s26, 0
    %p282 = por %p280, %p281
    %p283 = scmp.ne.s32.totalorder %s275, %s277
    %p284 = scmp.eq.s32.totalorder %s31, 1
    %p285 = por %p283, %p284
    %p286 = scmp.ne.s32.totalorder %s277, %s278
    %p287 = scmp.eq.s32.totalorder %s31, 0
    %p288 = por %p286, %p287
    %p289 = scmp.ne.s32.totalorder %s277, %s278
    %p290 = scmp.eq.s32.totalorder %s32, 1
    %p291 = por %p289, %p290
    %p293 = scmp.ne.s32.totalorder %s278, %s292
    %p294 = scmp.eq.s32.totalorder %s32, 0
    %p295 = por %p293, %p294
    %s297 = sadd.s32 %s296, 1
    %p300 = scmp.eq.s32.totalorder %s26, 1
    %p301 = scmp.ne.s32.totalorder %s296, %s298
    %p302 = scmp.eq.s32.totalorder %s26, 0
    %p303 = por %p301, %p302
    %p304 = scmp.ne.s32.totalorder %s296, %s298
    %p305 = scmp.eq.s32.totalorder %s31, 1
    %p306 = por %p304, %p305
    %p307 = scmp.ne.s32.totalorder %s298, %s299
    %p308 = scmp.eq.s32.totalorder %s31, 0
    %p309 = por %p307, %p308
    %p310 = scmp.ne.s32.totalorder %s298, %s299
    %p311 = scmp.eq.s32.totalorder %s32, 1
    %p312 = por %p310, %p311
    %p314 = scmp.ne.s32.totalorder %s299, %s313
    %p315 = scmp.eq.s32.totalorder %s32, 0
    %p316 = por %p314, %p315
    %s318 = sadd.s32 %s317, 1
    %p321 = scmp.eq.s32.totalorder %s26, 1
    %p322 = scmp.ne.s32.totalorder %s317, %s319
    %p323 = scmp.eq.s32.totalorder %s26, 0
    %p324 = por %p322, %p323
    %p325 = scmp.ne.s32.totalorder %s317, %s319
    %p326 = scmp.eq.s32.totalorder %s31, 1
    %p327 = por %p325, %p326
    %p328 = scmp.ne.s32.totalorder %s319, %s320
    %p329 = scmp.eq.s32.totalorder %s31, 0
    %p330 = por %p328, %p329
    %p331 = scmp.ne.s32.totalorder %s319, %s320
    %p332 = scmp.eq.s32.totalorder %s32, 1
    %p333 = por %p331, %p332
    %p335 = scmp.ne.s32.totalorder %s320, %s334
    %p336 = scmp.eq.s32.totalorder %s32, 0
    %p337 = por %p335, %p336
    %s339 = sadd.s32 %s338, 1
    %p342 = scmp.eq.s32.totalorder %s26, 1
    %p343 = scmp.ne.s32.totalorder %s338, %s340
    %p344 = scmp.eq.s32.totalorder %s26, 0
    %p345 = por %p343, %p344
    %p346 = scmp.ne.s32.totalorder %s338, %s340
    %p347 = scmp.eq.s32.totalorder %s31, 1
    %p348 = por %p346, %p347
    %p349 = scmp.ne.s32.totalorder %s340, %s341
    %p350 = scmp.eq.s32.totalorder %s31, 0
    %p351 = por %p349, %p350
    %p352 = scmp.ne.s32.totalorder %s340, %s341
    %p353 = scmp.eq.s32.totalorder %s32, 1
    %p354 = por %p352, %p353
    %p356 = scmp.ne.s32.totalorder %s341, %s355
    %p357 = scmp.eq.s32.totalorder %s32, 0
    %p358 = por %p356, %p357
    %s360 = sadd.s32 %s359, 1
    %p363 = scmp.eq.s32.totalorder %s26, 1
    %p364 = scmp.ne.s32.totalorder %s359, %s361
    %p365 = scmp.eq.s32.totalorder %s26, 0
    %p366 = por %p364, %p365
    %p367 = scmp.ne.s32.totalorder %s359, %s361
    %p368 = scmp.eq.s32.totalorder %s31, 1
    %p369 = por %p367, %p368
    %p370 = scmp.ne.s32.totalorder %s361, %s362
    %p371 = scmp.eq.s32.totalorder %s31, 0
    %p372 = por %p370, %p371
    %p373 = scmp.ne.s32.totalorder %s361, %s362
    %p374 = scmp.eq.s32.totalorder %s32, 1
    %p375 = por %p373, %p374
    %p377 = scmp.ne.s32.totalorder %s362, %s376
    %p378 = scmp.eq.s32.totalorder %s32, 0
    %p379 = por %p377, %p378
    %s381 = sadd.s32 %s380, 1
    %p384 = scmp.eq.s32.totalorder %s26, 1
    %p385 = scmp.ne.s32.totalorder %s380, %s382
    %p386 = scmp.eq.s32.totalorder %s26, 0
    %p387 = por %p385, %p386
    %p388 = scmp.ne.s32.totalorder %s380, %s382
    %p389 = scmp.eq.s32.totalorder %s31, 1
    %p390 = por %p388, %p389
    %p391 = scmp.ne.s32.totalorder %s382, %s383
    %p392 = scmp.eq.s32.totalorder %s31, 0
    %p393 = por %p391, %p392
    %p394 = scmp.ne.s32.totalorder %s382, %s383
    %p395 = scmp.eq.s32.totalorder %s32, 1
    %p396 = por %p394, %p395
    %p398 = scmp.ne.s32.totalorder %s383, %s397
    %p399 = scmp.eq.s32.totalorder %s32, 0
    %p400 = por %p398, %p399
    %s402 = sadd.s32 %s401, 1
    %p405 = scmp.eq.s32.totalorder %s26, 1
    %p406 = scmp.ne.s32.totalorder %s401, %s403
    %p407 = scmp.eq.s32.totalorder %s26, 0
    %p408 = por %p406, %p407
    %p409 = scmp.ne.s32.totalorder %s401, %s403
    %p410 = scmp.eq.s32.totalorder %s31, 1
    %p411 = por %p409, %p410
    %p412 = scmp.ne.s32.totalorder %s403, %s404
    %p413 = scmp.eq.s32.totalorder %s31, 0
    %p414 = por %p412, %p413
    %p415 = scmp.ne.s32.totalorder %s403, %s404
    %p416 = scmp.eq.s32.totalorder %s32, 1
    %p417 = por %p415, %p416
    %p419 = scmp.ne.s32.totalorder %s404, %s418
    %p420 = scmp.eq.s32.totalorder %s32, 0
    %p421 = por %p419, %p420
    %s422 = ssub.s32 %s26, %s33
    %p423 = scmp.eq.s32.totalorder %s422, 0
    %s425 = sadd.s32 %s424, 1
    %s426 = scalar_select %p423, %s424, %s425
    %p429 = pneg %p423
    %p430 = scmp.eq.s32.totalorder %s26, 1
    %p431 = por %p429, %p430
    %p432 = scmp.ne.s32.totalorder %s424, %s427
    %p433 = scmp.eq.s32.totalorder %s26, 0
    %p434 = por %p432, %p433
    %p435 = scmp.ne.s32.totalorder %s424, %s427
    %p436 = scmp.eq.s32.totalorder %s31, 1
    %p437 = por %p435, %p436
    %p438 = scmp.ne.s32.totalorder %s427, %s428
    %p439 = scmp.eq.s32.totalorder %s31, 0
    %p440 = por %p438, %p439
    %p441 = scmp.ne.s32.totalorder %s427, %s428
    %p442 = scmp.eq.s32.totalorder %s32, 1
    %p443 = por %p441, %p442
    %p445 = scmp.ne.s32.totalorder %s428, %s444
    %p446 = scmp.eq.s32.totalorder %s32, 0
    %p447 = por %p445, %p446
    %s448 = ssub.s32 %s26, %s33
    %p449 = scmp.eq.s32.totalorder %s448, 0
    %s451 = sadd.s32 %s450, 1
    %s452 = scalar_select %p449, %s450, %s451
    %p455 = pneg %p449
    %p456 = scmp.eq.s32.totalorder %s26, 1
    %p457 = por %p455, %p456
    %p458 = scmp.ne.s32.totalorder %s450, %s453
    %p459 = scmp.eq.s32.totalorder %s26, 0
    %p460 = por %p458, %p459
    %p461 = scmp.ne.s32.totalorder %s450, %s453
    %p462 = scmp.eq.s32.totalorder %s31, 1
    %p463 = por %p461, %p462
    %p464 = scmp.ne.s32.totalorder %s453, %s454
    %p465 = scmp.eq.s32.totalorder %s31, 0
    %p466 = por %p464, %p465
    %p467 = scmp.ne.s32.totalorder %s453, %s454
    %p468 = scmp.eq.s32.totalorder %s32, 1
    %p469 = por %p467, %p468
    %p471 = scmp.ne.s32.totalorder %s454, %s470
    %p472 = scmp.eq.s32.totalorder %s32, 0
    %p473 = por %p471, %p472
    %p474 = scmp.le.s32.totalorder 1, %s26
    %p475 = scmp.lt.s32.totalorder %s26, 3
    %p476 = pnand %p474, %p475
    %p477 = pneg %p476
    // Predicated region
    $region9: #{ac_conv_up_forward.1} parent=5 // pred_check
      _
    $region10: #{ac_conv_up_forward.1} parent=5 // pred_check_branch
      %479 = sbr.rel (%p476) target = $region12
    $region11: #{ac_conv_up_forward.1} parent=5 // pred_region
      %s480 = ssub.s32 %s26, 1
      // Predicated region
      $region13: #{ac_conv_up_forward.1} parent=11 // pred_check
        %p481 = pneg %p99
      $region14: #{ac_conv_up_forward.1} parent=11 // pred_check_branch
        %483 = sbr.rel (%p481) target = $region16
      $region15: #{ac_conv_up_forward.1} parent=11 // pred_region
        _
      $region16: #{ac_conv_up_forward.1} parent=11 // pred_fallthru
        _
      // Predicated region
      $region17: #{ac_conv_up_forward.1} parent=11 // pred_check
        %p484 = pneg %p120
      $region18: #{ac_conv_up_forward.1} parent=11 // pred_check_branch
        %486 = sbr.rel (%p484) target = $region20
      $region19: #{ac_conv_up_forward.1} parent=11 // pred_region
        _
      $region20: #{ac_conv_up_forward.1} parent=11 // pred_fallthru
        _
      // Predicated region
      $region21: #{ac_conv_up_forward.1} parent=11 // pred_check
        %p487 = pneg %p141
      $region22: #{ac_conv_up_forward.1} parent=11 // pred_check_branch
        %489 = sbr.rel (%p487) target = $region24
      $region23: #{ac_conv_up_forward.1} parent=11 // pred_region
        _
      $region24: #{ac_conv_up_forward.1} parent=11 // pred_fallthru
        _
      // Predicated region
      $region25: #{ac_conv_up_forward.1} parent=11 // pred_check
        %p490 = pneg %p162
      $region26: #{ac_conv_up_forward.1} parent=11 // pred_check_branch
        %492 = sbr.rel (%p490) target = $region28
      $region27: #{ac_conv_up_forward.1} parent=11 // pred_region
        _
      $region28: #{ac_conv_up_forward.1} parent=11 // pred_fallthru
        _
      // Predicated region
      $region29: #{ac_conv_up_forward.1} parent=11 // pred_check
        %p493 = pneg %p183
      $region30: #{ac_conv_up_forward.1} parent=11 // pred_check_branch
        %495 = sbr.rel (%p493) target = $region32
      $region31: #{ac_conv_up_forward.1} parent=11 // pred_region
        _
      $region32: #{ac_conv_up_forward.1} parent=11 // pred_fallthru
        _
      // Predicated region
      $region33: #{ac_conv_up_forward.1} parent=11 // pred_check
        %p496 = pneg %p204
      $region34: #{ac_conv_up_forward.1} parent=11 // pred_check_branch
        %498 = sbr.rel (%p496) target = $region36
      $region35: #{ac_conv_up_forward.1} parent=11 // pred_region
        _
      $region36: #{ac_conv_up_forward.1} parent=11 // pred_fallthru
        _
      // Predicated region
      $region37: #{ac_conv_up_forward.1} parent=11 // pred_check
        %p499 = pneg %p225
      $region38: #{ac_conv_up_forward.1} parent=11 // pred_check_branch
        %501 = sbr.rel (%p499) target = $region40
      $region39: #{ac_conv_up_forward.1} parent=11 // pred_region
        _
      $region40: #{ac_conv_up_forward.1} parent=11 // pred_fallthru
        _
      // Predicated region
      $region41: #{ac_conv_up_forward.1} parent=11 // pred_check
        %p502 = pneg %p246
      $region42: #{ac_conv_up_forward.1} parent=11 // pred_check_branch
        %504 = sbr.rel (%p502) target = $region44
      $region43: #{ac_conv_up_forward.1} parent=11 // pred_region
        _
      $region44: #{ac_conv_up_forward.1} parent=11 // pred_fallthru
        _
      // Predicated region
      $region45: #{ac_conv_up_forward.1} parent=11 // pred_check
        %p505 = pneg %p267
      $region46: #{ac_conv_up_forward.1} parent=11 // pred_check_branch
        %507 = sbr.rel (%p505) target = $region48
      $region47: #{ac_conv_up_forward.1} parent=11 // pred_region
        _
      $region48: #{ac_conv_up_forward.1} parent=11 // pred_fallthru
        _
      // Predicated region
      $region49: #{ac_conv_up_forward.1} parent=11 // pred_check
        %p508 = pneg %p288
      $region50: #{ac_conv_up_forward.1} parent=11 // pred_check_branch
        %510 = sbr.rel (%p508) target = $region52
      $region51: #{ac_conv_up_forward.1} parent=11 // pred_region
        _
      $region52: #{ac_conv_up_forward.1} parent=11 // pred_fallthru
        _
      // Predicated region
      $region53: #{ac_conv_up_forward.1} parent=11 // pred_check
        %p511 = pneg %p309
      $region54: #{ac_conv_up_forward.1} parent=11 // pred_check_branch
        %513 = sbr.rel (%p511) target = $region56
      $region55: #{ac_conv_up_forward.1} parent=11 // pred_region
        _
      $region56: #{ac_conv_up_forward.1} parent=11 // pred_fallthru
        _
      // Predicated region
      $region57: #{ac_conv_up_forward.1} parent=11 // pred_check
        %p514 = pneg %p330
      $region58: #{ac_conv_up_forward.1} parent=11 // pred_check_branch
        %516 = sbr.rel (%p514) target = $region60
      $region59: #{ac_conv_up_forward.1} parent=11 // pred_region
        _
      $region60: #{ac_conv_up_forward.1} parent=11 // pred_fallthru
        _
      // Predicated region
      $region61: #{ac_conv_up_forward.1} parent=11 // pred_check
        %p517 = pneg %p351
      $region62: #{ac_conv_up_forward.1} parent=11 // pred_check_branch
        %519 = sbr.rel (%p517) target = $region64
      $region63: #{ac_conv_up_forward.1} parent=11 // pred_region
        _
      $region64: #{ac_conv_up_forward.1} parent=11 // pred_fallthru
        _
      // Predicated region
      $region65: #{ac_conv_up_forward.1} parent=11 // pred_check
        %p520 = pneg %p372
      $region66: #{ac_conv_up_forward.1} parent=11 // pred_check_branch
        %522 = sbr.rel (%p520) target = $region68
      $region67: #{ac_conv_up_forward.1} parent=11 // pred_region
        _
      $region68: #{ac_conv_up_forward.1} parent=11 // pred_fallthru
        _
      // Predicated region
      $region69: #{ac_conv_up_forward.1} parent=11 // pred_check
        %p523 = pneg %p393
      $region70: #{ac_conv_up_forward.1} parent=11 // pred_check_branch
        %525 = sbr.rel (%p523) target = $region72
      $region71: #{ac_conv_up_forward.1} parent=11 // pred_region
        _
      $region72: #{ac_conv_up_forward.1} parent=11 // pred_fallthru
        _
      // Predicated region
      $region73: #{ac_conv_up_forward.1} parent=11 // pred_check
        %p526 = pneg %p414
      $region74: #{ac_conv_up_forward.1} parent=11 // pred_check_branch
        %528 = sbr.rel (%p526) target = $region76
      $region75: #{ac_conv_up_forward.1} parent=11 // pred_region
        _
      $region76: #{ac_conv_up_forward.1} parent=11 // pred_fallthru
        _
    $region12: #{ac_conv_up_forward.1} parent=5 // pred_fallthru
      _
    %p529 = scmp.lt.s32.totalorder %s26, 2
    // Predicated region
    $region77: #{ac_conv_up_forward.1} parent=5 // pred_check
      %p530 = pneg %p529
    $region78: #{ac_conv_up_forward.1} parent=5 // pred_check_branch
      %532 = sbr.rel (%p530) target = $region80
    $region79: #{ac_conv_up_forward.1} parent=5 // pred_region
      // Predicated region
      $region81: #{ac_conv_up_forward.1} parent=79 // pred_check
        %p533 = pneg %p46
      $region82: #{ac_conv_up_forward.1} parent=79 // pred_check_branch
        %535 = sbr.rel (%p533) target = $region84
      $region83: #{ac_conv_up_forward.1} parent=79 // pred_region
        %p536 = scmp.lt.s32.totalorder %s26, 1
        %s537 = scalar_select %p536, %s26, 1
        %s538 = smul.addr %s537, 8
        %s539 = smul.addr %s538, 4
        %s540 = scalar_lea.vmem %s0, %s539
      $region84: #{ac_conv_up_forward.1} parent=79 // pred_fallthru
        _
      // Predicated region
      $region85: #{ac_conv_up_forward.1} parent=79 // pred_check
        %p541 = pneg %p72
      $region86: #{ac_conv_up_forward.1} parent=79 // pred_check_branch
        %543 = sbr.rel (%p541) target = $region88
      $region87: #{ac_conv_up_forward.1} parent=79 // pred_region
        %p544 = scmp.lt.s32.totalorder %s26, 1
        %s545 = scalar_select %p544, %s26, 1
        %s546 = smul.addr %s545, 4
        %s547 = smul.addr %s546, 4
        %s548 = scalar_lea.vmem %s1, %s547
      $region88: #{ac_conv_up_forward.1} parent=79 // pred_fallthru
        _
    $region80: #{ac_conv_up_forward.1} parent=5 // pred_fallthru
      _
    %p549 = scmp.le.s32.totalorder 1, %s26
    %p550 = scmp.lt.s32.totalorder %s26, 3
    %p551 = pnand %p549, %p550
    %p552 = pneg %p551
    // Predicated region
    $region89: #{ac_conv_up_forward.1} parent=5 // pred_check
      _
    $region90: #{ac_conv_up_forward.1} parent=5 // pred_check_branch
      %554 = sbr.rel (%p551) target = $region92
    $region91: #{ac_conv_up_forward.1} parent=5 // pred_region
      %s555 = ssub.s32 %s26, 1
      %p556 = scmp.lt.s32.totalorder %s31, 1
      %s557 = scalar_select %p556, %s31, 1
      %s558 = smul.addr %s557, 8
      %s559 = smul.addr %s558, 4
      %s560 = scalar_lea.vmem %s0, %s559
      %p561 = pneg %p52
      %p562 = pneg %p49
      %p563 = scmp.lt.s32.totalorder %s31, 1
      %s564 = scalar_select %p563, %s31, 1
      %s565 = smul.addr %s564, 4
      %s566 = smul.addr %s565, 4
      %s567 = scalar_lea.vmem %s1, %s566
      %p568 = pneg %p78
      %p569 = pneg %p75
      %p570 = pneg %p99
      %p571 = pneg %p96
      %p572 = pneg %p120
      %p573 = pneg %p117
      %p574 = pneg %p141
      %p575 = pneg %p138
      %p576 = pneg %p162
      %p577 = pneg %p159
      %p578 = pneg %p183
      %p579 = pneg %p180
      %p580 = pneg %p204
      %p581 = pneg %p201
      %p582 = pneg %p225
      %p583 = pneg %p222
      %p584 = pneg %p246
      %p585 = pneg %p243
      %p586 = pneg %p267
      %p587 = pneg %p264
      %p588 = pneg %p288
      %p589 = pneg %p285
      %p590 = pneg %p309
      %p591 = pneg %p306
      %p592 = pneg %p330
      %p593 = pneg %p327
      %p594 = pneg %p351
      %p595 = pneg %p348
      %p596 = pneg %p372
      %p597 = pneg %p369
      %p598 = pneg %p393
      %p599 = pneg %p390
      %p600 = pneg %p414
      %p601 = pneg %p411
      %p602 = pneg %p440
      %p603 = pneg %p437
      %p604 = scmp.lt.s32.totalorder %s31, 1
      %s605 = scalar_select %p604, %s31, 1
      %s606 = smul.addr %s605, 8
      %s607 = smul.addr %s606, 8
      %s608 = scalar_lea.vmem %s18, %s607
      %p609 = pneg %p466
      %p610 = pneg %p463
      %p611 = scmp.lt.s32.totalorder %s31, 1
      %s612 = scalar_select %p611, %s31, 1
      %s613 = smul.addr %s612, 4
      %s614 = smul.addr %s613, 8
      %s615 = scalar_lea.vmem %s19, %s614
      %p616 = scmp.lt.s32.totalorder %s31, 1
      %s617 = scalar_select %p616, %s31, 1
      %s618 = smul.addr %s617, 8
      %s619 = smul.addr %s618, 4
      %s620 = scalar_lea.vmem %s0, %s619
      %p621 = scmp.lt.s32.totalorder %s31, 1
      %s622 = scalar_select %p621, %s31, 1
      %s623 = smul.addr %s622, 4
      %s624 = smul.addr %s623, 4
      %s625 = scalar_lea.vmem %s1, %s624
      %p626 = scmp.lt.s32.totalorder %s31, 1
      %s627 = scalar_select %p626, %s31, 1
      %s628 = smul.addr %s627, 8
      %s629 = smul.addr %s628, 8
      %s630 = scalar_lea.vmem %s18, %s629
      %p631 = scmp.lt.s32.totalorder %s31, 1
      %s632 = scalar_select %p631, %s31, 1
      %s633 = smul.addr %s632, 4
      %s634 = smul.addr %s633, 8
      %s635 = scalar_lea.vmem %s19, %s634
      %v636 = vld [vmem:[%s620] sm:$0xff]
      %v637 = vld [vmem:[%s620 + $0x8] sm:$0xff]
      %v638 = vld [vmem:[%s620 + $0x10] sm:$0xff]
      %v639 = vld [vmem:[%s620 + $0x18] sm:$0xff]
      %v640 = vld [vmem:[%s2] sm:$0xff]
      %v645 = vcombine.high %v636, %v636
      %v646 = vcombine.high %v637, %v637
      %v647 = vcombine.high %v638, %v638
      %v648 = vcombine.high %v639, %v639
      %v654 = vlaneseq
      %v655 = vshrl.u32 %v654, 7
      %v656 = vsub.s32 0, %v655
      %v657 = vrot.slane %v640, %v656
      %v658 = vlaneseq
      %v659 = vshrl.u32 %v658, 7
      %v660 = vsub.s32 1, %v659
      %v661 = vrot.slane %v640, %v660
      %v662 = vlaneseq
      %v663 = vshrl.u32 %v662, 7
      %v664 = vsub.s32 2, %v663
      %v665 = vrot.slane %v640, %v664
      %v666 = vlaneseq
      %v667 = vshrl.u32 %v666, 7
      %v668 = vsub.s32 3, %v667
      %v669 = vrot.slane %v640, %v668
      %v670 = vlaneseq
      %v671 = vshrl.u32 %v670, 7
      %v672 = vsub.s32 4, %v671
      %v673 = vrot.slane %v640, %v672
      %v674 = vlaneseq
      %v675 = vshrl.u32 %v674, 7
      %v676 = vsub.s32 5, %v675
      %v677 = vrot.slane %v640, %v676
      %v678 = vlaneseq
      %v679 = vshrl.u32 %v678, 7
      %v680 = vsub.s32 6, %v679
      %v681 = vrot.slane %v640, %v680
      %v682 = vlaneseq
      %v683 = vshrl.u32 %v682, 7
      %v684 = vsub.s32 7, %v683
      %v685 = vrot.slane %v640, %v684
      %vm694 = vcmask 1043456
      %v695 = vsel %vm694, %v636, %v657
      %v696 = vsel %vm694, %v645, %v661
      %v697 = vsel %vm694, %v637, %v665
      %v698 = vsel %vm694, %v646, %v669
      %v699 = vsel %vm694, %v638, %v673
      %v700 = vsel %vm694, %v647, %v677
      %v701 = vsel %vm694, %v639, %v681
      %v702 = vsel %vm694, %v648, %v685
      %703 = vrot.lane.b32.xlu0 %v695, 32
      %v704 = vpop.permute.xlu0 %703
      %705 = vrot.lane.b32.xlu0 %v696, 32
      %v706 = vpop.permute.xlu0 %705
      %707 = vrot.lane.b32.xlu0 %v697, 32
      %v708 = vpop.permute.xlu0 %707
      %709 = vrot.lane.b32.xlu0 %v698, 32
      %v710 = vpop.permute.xlu0 %709
      %711 = vrot.lane.b32.xlu0 %v699, 32
      %v712 = vpop.permute.xlu0 %711
      %713 = vrot.lane.b32.xlu0 %v700, 32
      %v714 = vpop.permute.xlu0 %713
      %715 = vrot.lane.b32.xlu0 %v701, 32
      %v716 = vpop.permute.xlu0 %715
      %717 = vrot.lane.b32.xlu0 %v702, 32
      %v718 = vpop.permute.xlu0 %717
      %v719 = vlaneseq
      %v720 = vand.u32 %v719, 127
      %vm721 = vcmp.lt.s32.totalorder %v720, 32
      %v722 = vsel %vm721, %v716, %v718
      %v723 = vsel %vm721, %v714, %v716
      %v724 = vsel %vm721, %v712, %v714
      %v725 = vsel %vm721, %v710, %v712
      %v726 = vsel %vm721, %v708, %v710
      %v727 = vsel %vm721, %v706, %v708
      %v728 = vsel %vm721, %v704, %v706
      %v729 = vsel %vm721, %v718, %v704
      %v730 = vld [vmem:[%s14] sm:$0xff]
      %v732 = vlaneseq
      %v733 = vshrl.u32 %v732, 7
      %v734 = vsub.s32 0, %v733
      %v735 = vrot.slane %v730, %v734
      %v736 = vlaneseq
      %v737 = vshrl.u32 %v736, 7
      %v738 = vsub.s32 1, %v737
      %v739 = vrot.slane %v730, %v738
      %v740 = vlaneseq
      %v741 = vshrl.u32 %v740, 7
      %v742 = vsub.s32 2, %v741
      %v743 = vrot.slane %v730, %v742
      %v744 = vlaneseq
      %v745 = vshrl.u32 %v744, 7
      %v746 = vsub.s32 3, %v745
      %v747 = vrot.slane %v730, %v746
      %v748 = vlaneseq
      %v749 = vshrl.u32 %v748, 7
      %v750 = vsub.s32 4, %v749
      %v751 = vrot.slane %v730, %v750
      %v752 = vlaneseq
      %v753 = vshrl.u32 %v752, 7
      %v754 = vsub.s32 5, %v753
      %v755 = vrot.slane %v730, %v754
      %v756 = vlaneseq
      %v757 = vshrl.u32 %v756, 7
      %v758 = vsub.s32 6, %v757
      %v759 = vrot.slane %v730, %v758
      %v760 = vlaneseq
      %v761 = vshrl.u32 %v760, 7
      %v762 = vsub.s32 7, %v761
      %v763 = vrot.slane %v730, %v762
      %v772 = vmul.f32 %v729, %v735
      %v773 = vmul.f32 %v728, %v739
      %v774 = vmul.f32 %v727, %v743
      %v775 = vmul.f32 %v726, %v747
      %v776 = vmul.f32 %v725, %v751
      %v777 = vmul.f32 %v724, %v755
      %v778 = vmul.f32 %v723, %v759
      %v779 = vmul.f32 %v722, %v763
      %780 = vrot.lane.b32.xlu0 %v695, 96
      %v781 = vpop.permute.xlu0 %780
      %782 = vrot.lane.b32.xlu0 %v696, 96
      %v783 = vpop.permute.xlu0 %782
      %784 = vrot.lane.b32.xlu0 %v697, 96
      %v785 = vpop.permute.xlu0 %784
      %786 = vrot.lane.b32.xlu0 %v698, 96
      %v787 = vpop.permute.xlu0 %786
      %788 = vrot.lane.b32.xlu0 %v699, 96
      %v789 = vpop.permute.xlu0 %788
      %790 = vrot.lane.b32.xlu0 %v700, 96
      %v791 = vpop.permute.xlu0 %790
      %792 = vrot.lane.b32.xlu0 %v701, 96
      %v793 = vpop.permute.xlu0 %792
      %794 = vrot.lane.b32.xlu0 %v702, 96
      %v795 = vpop.permute.xlu0 %794
      %vm796 = vcmp.lt.s32.totalorder %v720, 96
      %v797 = vsel %vm796, %v793, %v795
      %v798 = vsel %vm796, %v791, %v793
      %v799 = vsel %vm796, %v789, %v791
      %v800 = vsel %vm796, %v787, %v789
      %v801 = vsel %vm796, %v785, %v787
      %v802 = vsel %vm796, %v783, %v785
      %v803 = vsel %vm796, %v781, %v783
      %v804 = vsel %vm796, %v795, %v781
      %s805 = scalar_lea.vmem %s14, 16
      %v806 = vld [vmem:[%s805] sm:$0xff]
      %v808 = vlaneseq
      %v809 = vshrl.u32 %v808, 7
      %v810 = vsub.s32 0, %v809
      %v811 = vrot.slane %v806, %v810
      %v812 = vlaneseq
      %v813 = vshrl.u32 %v812, 7
      %v814 = vsub.s32 1, %v813
      %v815 = vrot.slane %v806, %v814
      %v816 = vlaneseq
      %v817 = vshrl.u32 %v816, 7
      %v818 = vsub.s32 2, %v817
      %v819 = vrot.slane %v806, %v818
      %v820 = vlaneseq
      %v821 = vshrl.u32 %v820, 7
      %v822 = vsub.s32 3, %v821
      %v823 = vrot.slane %v806, %v822
      %v824 = vlaneseq
      %v825 = vshrl.u32 %v824, 7
      %v826 = vsub.s32 4, %v825
      %v827 = vrot.slane %v806, %v826
      %v828 = vlaneseq
      %v829 = vshrl.u32 %v828, 7
      %v830 = vsub.s32 5, %v829
      %v831 = vrot.slane %v806, %v830
      %v832 = vlaneseq
      %v833 = vshrl.u32 %v832, 7
      %v834 = vsub.s32 6, %v833
      %v835 = vrot.slane %v806, %v834
      %v836 = vlaneseq
      %v837 = vshrl.u32 %v836, 7
      %v838 = vsub.s32 7, %v837
      %v839 = vrot.slane %v806, %v838
      %v848 = vmul.f32 %v803, %v811
      %v849 = vmul.f32 %v802, %v815
      %v850 = vmul.f32 %v801, %v819
      %v851 = vmul.f32 %v800, %v823
      %v852 = vmul.f32 %v799, %v827
      %v853 = vmul.f32 %v798, %v831
      %v854 = vmul.f32 %v797, %v835
      %v855 = vmul.f32 %v804, %v839
      %v864 = vrot.slane %v695, 3
      %v865 = vrot.slane %v696, 3
      %v866 = vrot.slane %v697, 3
      %v867 = vrot.slane %v698, 3
      %v868 = vrot.slane %v699, 3
      %v869 = vrot.slane %v700, 3
      %v870 = vrot.slane %v701, 3
      %v871 = vrot.slane %v702, 3
      %v888 = vrot.slane %v848, 6
      %v889 = vrot.slane %v849, 6
      %v890 = vrot.slane %v850, 6
      %v891 = vrot.slane %v851, 6
      %v892 = vrot.slane %v852, 6
      %v893 = vrot.slane %v853, 6
      %v894 = vrot.slane %v854, 6
      %v895 = vrot.slane %v855, 6
      %vm904 = vcmask 1044480
      %v905 = vsel %vm904, %v772, %v864
      %v906 = vsel %vm904, %v773, %v865
      %v907 = vsel %vm904, %v774, %v866
      %v908 = vsel %vm904, %v775, %v867
      %v909 = vsel %vm904, %v776, %v868
      %v910 = vsel %vm904, %v777, %v869
      %v911 = vsel %vm904, %v778, %v870
      %v912 = vsel %vm904, %v779, %v871
      %vm913 = vcmask 1041408
      %v914 = vsel %vm913, %v864, %v888
      %v915 = vsel %vm913, %v865, %v889
      %v916 = vsel %vm913, %v866, %v890
      %v917 = vsel %vm913, %v867, %v891
      %v918 = vsel %vm913, %v868, %v892
      %v919 = vsel %vm913, %v869, %v893
      %v920 = vsel %vm913, %v870, %v894
      %v921 = vsel %vm913, %v871, %v895
      %v922 = vld [vmem:[%s6] sm:$0xff]
      %v923 = vld [vmem:[%s10] sm:$0xff]
      %925 = vset.pattern.permute.xlu0 0
      %926 = vperm.xlu0 %925, %v923
      %v927 = vpop.permute.xlu0 %926
      %vm929 = vcmask 121856
      %v931 = vsel %vm929, %v922, 0
      %vm933 = vcmask 1046528
      %v935 = vsel %vm933, %v914, 0
      %v938 = vsel %vm933, %v915, 0
      %v941 = vsel %vm933, %v916, 0
      %v944 = vsel %vm933, %v917, 0
      %v947 = vsel %vm933, %v918, 0
      %v950 = vsel %vm933, %v919, 0
      %v953 = vsel %vm933, %v920, 0
      %v956 = vsel %vm933, %v921, 0
      %958 = vmatprep.subr.mxu0 %v906
      %959 = vmatpush1.msra.mxu0 %v905
      %960 = vmatprep.subr.mxu0 %v938
      %961 = vmatpush1.msra.mxu0 %v935
      %962 = vmatprep.subr.mxu0 0.0
      %963 = vmatpush1.msra.mxu0 0.0
      %964 = vmatprep.subr.mxu0 0.0
      %965 = vmatpush1.msra.mxu0 0.0
      %966 = vmatprep.subr.mxu0 0.0
      %967 = vmatpush1.msra.mxu0 0.0
      %968 = vmatprep.subr.mxu0 0.0
      %969 = vmatpush1.msra.mxu0 0.0
      %970 = vmatprep.subr.mxu0 0.0
      %971 = vmatpush1.msra.mxu0 0.0
      %972 = vmatprep.subr.mxu0 0.0
      %973 = vmatpush1.msra.mxu0 0.0
      %974 = vmatprep.subr.mxu0 0.0
      %975 = vmatpush1.msra.mxu0 0.0
      %976 = vmatprep.subr.mxu0 0.0
      %977 = vmatpush1.msra.mxu0 0.0
      %978 = vmatprep.subr.mxu0 0.0
      %979 = vmatpush1.msra.mxu0 0.0
      %980 = vmatprep.subr.mxu0 0.0
      %981 = vmatpush1.msra.mxu0 0.0
      %982 = vmatprep.subr.mxu0 0.0
      %983 = vmatpush1.msra.mxu0 0.0
      %984 = vmatprep.subr.mxu0 0.0
      %985 = vmatpush1.msra.mxu0 0.0
      %986 = vmatprep.subr.mxu0 0.0
      %987 = vmatpush1.msra.mxu0 0.0
      %988 = vmatprep.subr.mxu0 0.0
      %989 = vmatpush1.msra.mxu0 0.0
      %990 = vmatprep.subr.mxu0 0.0
      %991 = vmatpush1.msra.mxu0 0.0
      %992 = vmatprep.subr.mxu0 0.0
      %993 = vmatpush1.msra.mxu0 0.0
      %994 = vmatprep.subr.mxu0 0.0
      %995 = vmatpush1.msra.mxu0 0.0
      %996 = vmatprep.subr.mxu0 0.0
      %997 = vmatpush1.msra.mxu0 0.0
      %998 = vmatprep.subr.mxu0 0.0
      %999 = vmatpush1.msra.mxu0 0.0
      %1000 = vmatprep.subr.mxu0 0.0
      %1001 = vmatpush1.msra.mxu0 0.0
      %1002 = vmatprep.subr.mxu0 0.0
      %1003 = vmatpush1.msra.mxu0 0.0
      %1004 = vmatprep.subr.mxu0 0.0
      %1005 = vmatpush1.msra.mxu0 0.0
      %1006 = vmatprep.subr.mxu0 0.0
      %1007 = vmatpush1.msra.mxu0 0.0
      %1008 = vmatprep.subr.mxu0 0.0
      %1009 = vmatpush1.msra.mxu0 0.0
      %1010 = vmatprep.subr.mxu0 0.0
      %1011 = vmatpush1.msra.mxu0 0.0
      %1012 = vmatprep.subr.mxu0 0.0
      %1013 = vmatpush1.msra.mxu0 0.0
      %1014 = vmatprep.subr.mxu0 0.0
      %1015 = vmatpush1.msra.mxu0 0.0
      %1016 = vmatprep.subr.mxu0 0.0
      %1017 = vmatpush1.msra.mxu0 0.0
      %1018 = vmatprep.subr.mxu0 0.0
      %1019 = vmatpush1.msra.mxu0 0.0
      %1020 = vmatprep.subr.mxu0 0.0
      %1021 = vmatpush1.msra.mxu0 0.0
      %1022 = vmatprep.mubr.f32.mxu0 0.0
      %1023 = vmatmul.mubr.f32.gmra.mrb[0].mxu0 %v931
      %v1024 = vpop.f32.mrb[0].mxu0
      %v1025 = vadd.f32 %v927, %v1024
      %v1026 = vpop.f32.mrb[0].mxu0
      %v1027 = vadd.f32 %v927, %v1026
      %1028 = vdwg.mxu0
      %1029 = vmatprep.subr.mxu0 %v908
      %1030 = vmatpush1.msra.mxu0 %v907
      %1031 = vmatprep.subr.mxu0 %v944
      %1032 = vmatpush1.msra.mxu0 %v941
      %1033 = vmatprep.subr.mxu0 0.0
      %1034 = vmatpush1.msra.mxu0 0.0
      %1035 = vmatprep.subr.mxu0 0.0
      %1036 = vmatpush1.msra.mxu0 0.0
      %1037 = vmatprep.subr.mxu0 0.0
      %1038 = vmatpush1.msra.mxu0 0.0
      %1039 = vmatprep.subr.mxu0 0.0
      %1040 = vmatpush1.msra.mxu0 0.0
      %1041 = vmatprep.subr.mxu0 0.0
      %1042 = vmatpush1.msra.mxu0 0.0
      %1043 = vmatprep.subr.mxu0 0.0
      %1044 = vmatpush1.msra.mxu0 0.0
      %1045 = vmatprep.subr.mxu0 0.0
      %1046 = vmatpush1.msra.mxu0 0.0
      %1047 = vmatprep.subr.mxu0 0.0
      %1048 = vmatpush1.msra.mxu0 0.0
      %1049 = vmatprep.subr.mxu0 0.0
      %1050 = vmatpush1.msra.mxu0 0.0
      %1051 = vmatprep.subr.mxu0 0.0
      %1052 = vmatpush1.msra.mxu0 0.0
      %1053 = vmatprep.subr.mxu0 0.0
      %1054 = vmatpush1.msra.mxu0 0.0
      %1055 = vmatprep.subr.mxu0 0.0
      %1056 = vmatpush1.msra.mxu0 0.0
      %1057 = vmatprep.subr.mxu0 0.0
      %1058 = vmatpush1.msra.mxu0 0.0
      %1059 = vmatprep.subr.mxu0 0.0
      %1060 = vmatpush1.msra.mxu0 0.0
      %1061 = vmatprep.subr.mxu0 0.0
      %1062 = vmatpush1.msra.mxu0 0.0
      %1063 = vmatprep.subr.mxu0 0.0
      %1064 = vmatpush1.msra.mxu0 0.0
      %1065 = vmatprep.subr.mxu0 0.0
      %1066 = vmatpush1.msra.mxu0 0.0
      %1067 = vmatprep.subr.mxu0 0.0
      %1068 = vmatpush1.msra.mxu0 0.0
      %1069 = vmatprep.subr.mxu0 0.0
      %1070 = vmatpush1.msra.mxu0 0.0
      %1071 = vmatprep.subr.mxu0 0.0
      %1072 = vmatpush1.msra.mxu0 0.0
      %1073 = vmatprep.subr.mxu0 0.0
      %1074 = vmatpush1.msra.mxu0 0.0
      %1075 = vmatprep.subr.mxu0 0.0
      %1076 = vmatpush1.msra.mxu0 0.0
      %1077 = vmatprep.subr.mxu0 0.0
      %1078 = vmatpush1.msra.mxu0 0.0
      %1079 = vmatprep.subr.mxu0 0.0
      %1080 = vmatpush1.msra.mxu0 0.0
      %1081 = vmatprep.subr.mxu0 0.0
      %1082 = vmatpush1.msra.mxu0 0.0
      %1083 = vmatprep.subr.mxu0 0.0
      %1084 = vmatpush1.msra.mxu0 0.0
      %1085 = vmatprep.subr.mxu0 0.0
      %1086 = vmatpush1.msra.mxu0 0.0
      %1087 = vmatprep.subr.mxu0 0.0
      %1088 = vmatpush1.msra.mxu0 0.0
      %1089 = vmatprep.subr.mxu0 0.0
      %1090 = vmatpush1.msra.mxu0 0.0
      %1091 = vmatprep.subr.mxu0 0.0
      %1092 = vmatpush1.msra.mxu0 0.0
      %1093 = vmatprep.mubr.f32.mxu0 0.0
      %1094 = vmatmul.mubr.f32.gmra.mrb[0].mxu0 %v931
      %v1095 = vpop.f32.mrb[0].mxu0
      %v1096 = vadd.f32 %v927, %v1095
      %v1097 = vpop.f32.mrb[0].mxu0
      %v1098 = vadd.f32 %v927, %v1097
      %1099 = vdwg.mxu0
      %1100 = vmatprep.subr.mxu0 %v910
      %1101 = vmatpush1.msra.mxu0 %v909
      %1102 = vmatprep.subr.mxu0 %v950
      %1103 = vmatpush1.msra.mxu0 %v947
      %1104 = vmatprep.subr.mxu0 0.0
      %1105 = vmatpush1.msra.mxu0 0.0
      %1106 = vmatprep.subr.mxu0 0.0
      %1107 = vmatpush1.msra.mxu0 0.0
      %1108 = vmatprep.subr.mxu0 0.0
      %1109 = vmatpush1.msra.mxu0 0.0
      %1110 = vmatprep.subr.mxu0 0.0
      %1111 = vmatpush1.msra.mxu0 0.0
      %1112 = vmatprep.subr.mxu0 0.0
      %1113 = vmatpush1.msra.mxu0 0.0
      %1114 = vmatprep.subr.mxu0 0.0
      %1115 = vmatpush1.msra.mxu0 0.0
      %1116 = vmatprep.subr.mxu0 0.0
      %1117 = vmatpush1.msra.mxu0 0.0
      %1118 = vmatprep.subr.mxu0 0.0
      %1119 = vmatpush1.msra.mxu0 0.0
      %1120 = vmatprep.subr.mxu0 0.0
      %1121 = vmatpush1.msra.mxu0 0.0
      %1122 = vmatprep.subr.mxu0 0.0
      %1123 = vmatpush1.msra.mxu0 0.0
      %1124 = vmatprep.subr.mxu0 0.0
      %1125 = vmatpush1.msra.mxu0 0.0
      %1126 = vmatprep.subr.mxu0 0.0
      %1127 = vmatpush1.msra.mxu0 0.0
      %1128 = vmatprep.subr.mxu0 0.0
      %1129 = vmatpush1.msra.mxu0 0.0
      %1130 = vmatprep.subr.mxu0 0.0
      %1131 = vmatpush1.msra.mxu0 0.0
      %1132 = vmatprep.subr.mxu0 0.0
      %1133 = vmatpush1.msra.mxu0 0.0
      %1134 = vmatprep.subr.mxu0 0.0
      %1135 = vmatpush1.msra.mxu0 0.0
      %1136 = vmatprep.subr.mxu0 0.0
      %1137 = vmatpush1.msra.mxu0 0.0
      %1138 = vmatprep.subr.mxu0 0.0
      %1139 = vmatpush1.msra.mxu0 0.0
      %1140 = vmatprep.subr.mxu0 0.0
      %1141 = vmatpush1.msra.mxu0 0.0
      %1142 = vmatprep.subr.mxu0 0.0
      %1143 = vmatpush1.msra.mxu0 0.0
      %1144 = vmatprep.subr.mxu0 0.0
      %1145 = vmatpush1.msra.mxu0 0.0
      %1146 = vmatprep.subr.mxu0 0.0
      %1147 = vmatpush1.msra.mxu0 0.0
      %1148 = vmatprep.subr.mxu0 0.0
      %1149 = vmatpush1.msra.mxu0 0.0
      %1150 = vmatprep.subr.mxu0 0.0
      %1151 = vmatpush1.msra.mxu0 0.0
      %1152 = vmatprep.subr.mxu0 0.0
      %1153 = vmatpush1.msra.mxu0 0.0
      %1154 = vmatprep.subr.mxu0 0.0
      %1155 = vmatpush1.msra.mxu0 0.0
      %1156 = vmatprep.subr.mxu0 0.0
      %1157 = vmatpush1.msra.mxu0 0.0
      %1158 = vmatprep.subr.mxu0 0.0
      %1159 = vmatpush1.msra.mxu0 0.0
      %1160 = vmatprep.subr.mxu0 0.0
      %1161 = vmatpush1.msra.mxu0 0.0
      %1162 = vmatprep.subr.mxu0 0.0
      %1163 = vmatpush1.msra.mxu0 0.0
      %1164 = vmatprep.mubr.f32.mxu0 0.0
      %1165 = vmatmul.mubr.f32.gmra.mrb[0].mxu0 %v931
      %v1166 = vpop.f32.mrb[0].mxu0
      %v1167 = vadd.f32 %v927, %v1166
      %v1168 = vpop.f32.mrb[0].mxu0
      %v1169 = vadd.f32 %v927, %v1168
      %1170 = vdwg.mxu0
      %1171 = vmatprep.subr.mxu0 %v912
      %1172 = vmatpush1.msra.mxu0 %v911
      %1173 = vmatprep.subr.mxu0 %v956
      %1174 = vmatpush1.msra.mxu0 %v953
      %1175 = vmatprep.subr.mxu0 0.0
      %1176 = vmatpush1.msra.mxu0 0.0
      %1177 = vmatprep.subr.mxu0 0.0
      %1178 = vmatpush1.msra.mxu0 0.0
      %1179 = vmatprep.subr.mxu0 0.0
      %1180 = vmatpush1.msra.mxu0 0.0
      %1181 = vmatprep.subr.mxu0 0.0
      %1182 = vmatpush1.msra.mxu0 0.0
      %1183 = vmatprep.subr.mxu0 0.0
      %1184 = vmatpush1.msra.mxu0 0.0
      %1185 = vmatprep.subr.mxu0 0.0
      %1186 = vmatpush1.msra.mxu0 0.0
      %1187 = vmatprep.subr.mxu0 0.0
      %1188 = vmatpush1.msra.mxu0 0.0
      %1189 = vmatprep.subr.mxu0 0.0
      %1190 = vmatpush1.msra.mxu0 0.0
      %1191 = vmatprep.subr.mxu0 0.0
      %1192 = vmatpush1.msra.mxu0 0.0
      %1193 = vmatprep.subr.mxu0 0.0
      %1194 = vmatpush1.msra.mxu0 0.0
      %1195 = vmatprep.subr.mxu0 0.0
      %1196 = vmatpush1.msra.mxu0 0.0
      %1197 = vmatprep.subr.mxu0 0.0
      %1198 = vmatpush1.msra.mxu0 0.0
      %1199 = vmatprep.subr.mxu0 0.0
      %1200 = vmatpush1.msra.mxu0 0.0
      %1201 = vmatprep.subr.mxu0 0.0
      %1202 = vmatpush1.msra.mxu0 0.0
      %1203 = vmatprep.subr.mxu0 0.0
      %1204 = vmatpush1.msra.mxu0 0.0
      %1205 = vmatprep.subr.mxu0 0.0
      %1206 = vmatpush1.msra.mxu0 0.0
      %1207 = vmatprep.subr.mxu0 0.0
      %1208 = vmatpush1.msra.mxu0 0.0
      %1209 = vmatprep.subr.mxu0 0.0
      %1210 = vmatpush1.msra.mxu0 0.0
      %1211 = vmatprep.subr.mxu0 0.0
      %1212 = vmatpush1.msra.mxu0 0.0
      %1213 = vmatprep.subr.mxu0 0.0
      %1214 = vmatpush1.msra.mxu0 0.0
      %1215 = vmatprep.subr.mxu0 0.0
      %1216 = vmatpush1.msra.mxu0 0.0
      %1217 = vmatprep.subr.mxu0 0.0
      %1218 = vmatpush1.msra.mxu0 0.0
      %1219 = vmatprep.subr.mxu0 0.0
      %1220 = vmatpush1.msra.mxu0 0.0
      %1221 = vmatprep.subr.mxu0 0.0
      %1222 = vmatpush1.msra.mxu0 0.0
      %1223 = vmatprep.subr.mxu0 0.0
      %1224 = vmatpush1.msra.mxu0 0.0
      %1225 = vmatprep.subr.mxu0 0.0
      %1226 = vmatpush1.msra.mxu0 0.0
      %1227 = vmatprep.subr.mxu0 0.0
      %1228 = vmatpush1.msra.mxu0 0.0
      %1229 = vmatprep.subr.mxu0 0.0
      %1230 = vmatpush1.msra.mxu0 0.0
      %1231 = vmatprep.subr.mxu0 0.0
      %1232 = vmatpush1.msra.mxu0 0.0
      %1233 = vmatprep.subr.mxu0 0.0
      %1234 = vmatpush1.msra.mxu0 0.0
      %1235 = vmatprep.mubr.f32.mxu0 0.0
      %1236 = vmatmul.mubr.f32.gmra.mrb[0].mxu0 %v931
      %v1237 = vpop.f32.mrb[0].mxu0
      %v1238 = vadd.f32 %v927, %v1237
      %v1239 = vpop.f32.mrb[0].mxu0
      %v1240 = vadd.f32 %v927, %v1239
      %1241 = vdwg.mxu0
      %v1242 = vld [vmem:[%s3] sm:$0xff]
      %v1244 = vlaneseq
      %v1245 = vshrl.u32 %v1244, 7
      %v1246 = vsub.s32 0, %v1245
      %v1247 = vrot.slane %v1242, %v1246
      %v1248 = vlaneseq
      %v1249 = vshrl.u32 %v1248, 7
      %v1250 = vsub.s32 1, %v1249
      %v1251 = vrot.slane %v1242, %v1250
      %v1252 = vlaneseq
      %v1253 = vshrl.u32 %v1252, 7
      %v1254 = vsub.s32 2, %v1253
      %v1255 = vrot.slane %v1242, %v1254
      %v1256 = vlaneseq
      %v1257 = vshrl.u32 %v1256, 7
      %v1258 = vsub.s32 3, %v1257
      %v1259 = vrot.slane %v1242, %v1258
      %v1260 = vlaneseq
      %v1261 = vshrl.u32 %v1260, 7
      %v1262 = vsub.s32 4, %v1261
      %v1263 = vrot.slane %v1242, %v1262
      %v1264 = vlaneseq
      %v1265 = vshrl.u32 %v1264, 7
      %v1266 = vsub.s32 5, %v1265
      %v1267 = vrot.slane %v1242, %v1266
      %v1268 = vlaneseq
      %v1269 = vshrl.u32 %v1268, 7
      %v1270 = vsub.s32 6, %v1269
      %v1271 = vrot.slane %v1242, %v1270
      %v1272 = vlaneseq
      %v1273 = vshrl.u32 %v1272, 7
      %v1274 = vsub.s32 7, %v1273
      %v1275 = vrot.slane %v1242, %v1274
      %1284 = vrot.lane.b32.xlu0 %v1025, 1
      %v1285 = vpop.permute.xlu0 %1284
      %1286 = vrot.lane.b32.xlu0 %v1247, 1
      %v1287 = vpop.permute.xlu0 %1286
      %1288 = vrot.lane.b32.xlu0 %v1027, 1
      %v1289 = vpop.permute.xlu0 %1288
      %1290 = vrot.lane.b32.xlu0 %v1251, 1
      %v1291 = vpop.permute.xlu0 %1290
      %1292 = vrot.lane.b32.xlu0 %v1096, 1
      %v1293 = vpop.permute.xlu0 %1292
      %1294 = vrot.lane.b32.xlu0 %v1255, 1
      %v1295 = vpop.permute.xlu0 %1294
      %1296 = vrot.lane.b32.xlu0 %v1098, 1
      %v1297 = vpop.permute.xlu0 %1296
      %1298 = vrot.lane.b32.xlu0 %v1259, 1
      %v1299 = vpop.permute.xlu0 %1298
      %1300 = vrot.lane.b32.xlu0 %v1167, 1
      %v1301 = vpop.permute.xlu0 %1300
      %1302 = vrot.lane.b32.xlu0 %v1263, 1
      %v1303 = vpop.permute.xlu0 %1302
      %1304 = vrot.lane.b32.xlu0 %v1169, 1
      %v1305 = vpop.permute.xlu0 %1304
      %1306 = vrot.lane.b32.xlu0 %v1267, 1
      %v1307 = vpop.permute.xlu0 %1306
      %1308 = vrot.lane.b32.xlu0 %v1238, 1
      %v1309 = vpop.permute.xlu0 %1308
      %1310 = vrot.lane.b32.xlu0 %v1271, 1
      %v1311 = vpop.permute.xlu0 %1310
      %1312 = vrot.lane.b32.xlu0 %v1240, 1
      %v1313 = vpop.permute.xlu0 %1312
      %1314 = vrot.lane.b32.xlu0 %v1275, 1
      %v1315 = vpop.permute.xlu0 %1314
      %vm1316 = vcmp.lt.s32.totalorder %v720, 1
      %v1317 = vsel %vm1316, %v1309, %v1313
      %v1318 = vsel %vm1316, %v1311, %v1315
      %v1319 = vsel %vm1316, %v1305, %v1309
      %v1320 = vsel %vm1316, %v1307, %v1311
      %v1321 = vsel %vm1316, %v1301, %v1305
      %v1322 = vsel %vm1316, %v1303, %v1307
      %v1323 = vsel %vm1316, %v1297, %v1301
      %v1324 = vsel %vm1316, %v1299, %v1303
      %v1325 = vsel %vm1316, %v1293, %v1297
      %v1326 = vsel %vm1316, %v1295, %v1299
      %v1327 = vsel %vm1316, %v1289, %v1293
      %v1328 = vsel %vm1316, %v1291, %v1295
      %v1329 = vsel %vm1316, %v1285, %v1289
      %v1330 = vsel %vm1316, %v1287, %v1291
      %v1331 = vsel %vm1316, %v1313, %v1285
      %v1332 = vsel %vm1316, %v1315, %v1287
      %v1333 = vld [vmem:[%s15] sm:$0xff]
      %v1335 = vlaneseq
      %v1336 = vshrl.u32 %v1335, 7
      %v1337 = vsub.s32 0, %v1336
      %v1338 = vrot.slane %v1333, %v1337
      %v1339 = vlaneseq
      %v1340 = vshrl.u32 %v1339, 7
      %v1341 = vsub.s32 1, %v1340
      %v1342 = vrot.slane %v1333, %v1341
      %v1343 = vlaneseq
      %v1344 = vshrl.u32 %v1343, 7
      %v1345 = vsub.s32 2, %v1344
      %v1346 = vrot.slane %v1333, %v1345
      %v1347 = vlaneseq
      %v1348 = vshrl.u32 %v1347, 7
      %v1349 = vsub.s32 3, %v1348
      %v1350 = vrot.slane %v1333, %v1349
      %v1351 = vlaneseq
      %v1352 = vshrl.u32 %v1351, 7
      %v1353 = vsub.s32 4, %v1352
      %v1354 = vrot.slane %v1333, %v1353
      %v1355 = vlaneseq
      %v1356 = vshrl.u32 %v1355, 7
      %v1357 = vsub.s32 5, %v1356
      %v1358 = vrot.slane %v1333, %v1357
      %v1359 = vlaneseq
      %v1360 = vshrl.u32 %v1359, 7
      %v1361 = vsub.s32 6, %v1360
      %v1362 = vrot.slane %v1333, %v1361
      %v1363 = vlaneseq
      %v1364 = vshrl.u32 %v1363, 7
      %v1365 = vsub.s32 7, %v1364
      %v1366 = vrot.slane %v1333, %v1365
      %v1375 = vmul.f32 %v1331, %v1338
      %v1376 = vmul.f32 %v1329, %v1342
      %v1377 = vmul.f32 %v1327, %v1346
      %v1378 = vmul.f32 %v1325, %v1350
      %v1379 = vmul.f32 %v1323, %v1354
      %v1380 = vmul.f32 %v1321, %v1358
      %v1381 = vmul.f32 %v1319, %v1362
      %v1382 = vmul.f32 %v1317, %v1366
      %v1383 = vmul.f32 %v1332, %v1338
      %v1384 = vmul.f32 %v1330, %v1342
      %v1385 = vmul.f32 %v1328, %v1346
      %v1386 = vmul.f32 %v1326, %v1350
      %v1387 = vmul.f32 %v1324, %v1354
      %v1388 = vmul.f32 %v1322, %v1358
      %v1389 = vmul.f32 %v1320, %v1362
      %v1390 = vmul.f32 %v1318, %v1366
      %1391 = vrot.lane.b32.xlu0 %v1025, 127
      %v1392 = vpop.permute.xlu0 %1391
      %1393 = vrot.lane.b32.xlu0 %v1247, 127
      %v1394 = vpop.permute.xlu0 %1393
      %1395 = vrot.lane.b32.xlu0 %v1027, 127
      %v1396 = vpop.permute.xlu0 %1395
      %1397 = vrot.lane.b32.xlu0 %v1251, 127
      %v1398 = vpop.permute.xlu0 %1397
      %1399 = vrot.lane.b32.xlu0 %v1096, 127
      %v1400 = vpop.permute.xlu0 %1399
      %1401 = vrot.lane.b32.xlu0 %v1255, 127
      %v1402 = vpop.permute.xlu0 %1401
      %1403 = vrot.lane.b32.xlu0 %v1098, 127
      %v1404 = vpop.permute.xlu0 %1403
      %1405 = vrot.lane.b32.xlu0 %v1259, 127
      %v1406 = vpop.permute.xlu0 %1405
      %1407 = vrot.lane.b32.xlu0 %v1167, 127
      %v1408 = vpop.permute.xlu0 %1407
      %1409 = vrot.lane.b32.xlu0 %v1263, 127
      %v1410 = vpop.permute.xlu0 %1409
      %1411 = vrot.lane.b32.xlu0 %v1169, 127
      %v1412 = vpop.permute.xlu0 %1411
      %1413 = vrot.lane.b32.xlu0 %v1267, 127
      %v1414 = vpop.permute.xlu0 %1413
      %1415 = vrot.lane.b32.xlu0 %v1238, 127
      %v1416 = vpop.permute.xlu0 %1415
      %1417 = vrot.lane.b32.xlu0 %v1271, 127
      %v1418 = vpop.permute.xlu0 %1417
      %1419 = vrot.lane.b32.xlu0 %v1240, 127
      %v1420 = vpop.permute.xlu0 %1419
      %1421 = vrot.lane.b32.xlu0 %v1275, 127
      %v1422 = vpop.permute.xlu0 %1421
      %vm1423 = vcmp.lt.s32.totalorder %v720, 127
      %v1424 = vsel %vm1423, %v1416, %v1420
      %v1425 = vsel %vm1423, %v1418, %v1422
      %v1426 = vsel %vm1423, %v1412, %v1416
      %v1427 = vsel %vm1423, %v1414, %v1418
      %v1428 = vsel %vm1423, %v1408, %v1412
      %v1429 = vsel %vm1423, %v1410, %v1414
      %v1430 = vsel %vm1423, %v1404, %v1408
      %v1431 = vsel %vm1423, %v1406, %v1410
      %v1432 = vsel %vm1423, %v1400, %v1404
      %v1433 = vsel %vm1423, %v1402, %v1406
      %v1434 = vsel %vm1423, %v1396, %v1400
      %v1435 = vsel %vm1423, %v1398, %v1402
      %v1436 = vsel %vm1423, %v1392, %v1396
      %v1437 = vsel %vm1423, %v1394, %v1398
      %v1438 = vsel %vm1423, %v1420, %v1392
      %v1439 = vsel %vm1423, %v1422, %v1394
      %s1440 = scalar_lea.vmem %s15, 16
      %v1441 = vld [vmem:[%s1440] sm:$0xff]
      %v1443 = vlaneseq
      %v1444 = vshrl.u32 %v1443, 7
      %v1445 = vsub.s32 0, %v1444
      %v1446 = vrot.slane %v1441, %v1445
      %v1447 = vlaneseq
      %v1448 = vshrl.u32 %v1447, 7
      %v1449 = vsub.s32 1, %v1448
      %v1450 = vrot.slane %v1441, %v1449
      %v1451 = vlaneseq
      %v1452 = vshrl.u32 %v1451, 7
      %v1453 = vsub.s32 2, %v1452
      %v1454 = vrot.slane %v1441, %v1453
      %v1455 = vlaneseq
      %v1456 = vshrl.u32 %v1455, 7
      %v1457 = vsub.s32 3, %v1456
      %v1458 = vrot.slane %v1441, %v1457
      %v1459 = vlaneseq
      %v1460 = vshrl.u32 %v1459, 7
      %v1461 = vsub.s32 4, %v1460
      %v1462 = vrot.slane %v1441, %v1461
      %v1463 = vlaneseq
      %v1464 = vshrl.u32 %v1463, 7
      %v1465 = vsub.s32 5, %v1464
      %v1466 = vrot.slane %v1441, %v1465
      %v1467 = vlaneseq
      %v1468 = vshrl.u32 %v1467, 7
      %v1469 = vsub.s32 6, %v1468
      %v1470 = vrot.slane %v1441, %v1469
      %v1471 = vlaneseq
      %v1472 = vshrl.u32 %v1471, 7
      %v1473 = vsub.s32 7, %v1472
      %v1474 = vrot.slane %v1441, %v1473
      %v1483 = vmul.f32 %v1436, %v1446
      %v1484 = vmul.f32 %v1434, %v1450
      %v1485 = vmul.f32 %v1432, %v1454
      %v1486 = vmul.f32 %v1430, %v1458
      %v1487 = vmul.f32 %v1428, %v1462
      %v1488 = vmul.f32 %v1426, %v1466
      %v1489 = vmul.f32 %v1424, %v1470
      %v1490 = vmul.f32 %v1438, %v1474
      %v1491 = vmul.f32 %v1437, %v1446
      %v1492 = vmul.f32 %v1435, %v1450
      %v1493 = vmul.f32 %v1433, %v1454
      %v1494 = vmul.f32 %v1431, %v1458
      %v1495 = vmul.f32 %v1429, %v1462
      %v1496 = vmul.f32 %v1427, %v1466
      %v1497 = vmul.f32 %v1425, %v1470
      %v1498 = vmul.f32 %v1439, %v1474
      %vm1507 = vcmask 1040384
      %v1508 = vrot.slane %v1025, 7
      %v1509 = vrot.slane %v1027, 7
      %v1510 = vrot.slane %v1096, 7
      %v1511 = vrot.slane %v1098, 7
      %v1512 = vrot.slane %v1167, 7
      %v1513 = vrot.slane %v1169, 7
      %v1514 = vrot.slane %v1238, 7
      %v1515 = vrot.slane %v1240, 7
      %v1516 = vrot.slane %v1247, 7
      %v1517 = vsel %vm1507, %v1508, %v1516
      %v1518 = vrot.slane %v1251, 7
      %v1519 = vsel %vm1507, %v1509, %v1518
      %v1520 = vrot.slane %v1255, 7
      %v1521 = vsel %vm1507, %v1510, %v1520
      %v1522 = vrot.slane %v1259, 7
      %v1523 = vsel %vm1507, %v1511, %v1522
      %v1524 = vrot.slane %v1263, 7
      %v1525 = vsel %vm1507, %v1512, %v1524
      %v1526 = vrot.slane %v1267, 7
      %v1527 = vsel %vm1507, %v1513, %v1526
      %v1528 = vrot.slane %v1271, 7
      %v1529 = vsel %vm1507, %v1514, %v1528
      %v1530 = vrot.slane %v1275, 7
      %v1531 = vsel %vm1507, %v1515, %v1530
      %v1564 = vrot.slane %v1483, 6
      %v1565 = vrot.slane %v1484, 6
      %v1566 = vrot.slane %v1485, 6
      %v1567 = vrot.slane %v1486, 6
      %v1568 = vrot.slane %v1487, 6
      %v1569 = vrot.slane %v1488, 6
      %v1570 = vrot.slane %v1489, 6
      %v1571 = vrot.slane %v1490, 6
      %v1572 = vrot.slane %v1491, 6
      %v1573 = vsel %vm913, %v1564, %v1572
      %v1574 = vrot.slane %v1492, 6
      %v1575 = vsel %vm913, %v1565, %v1574
      %v1576 = vrot.slane %v1493, 6
      %v1577 = vsel %vm913, %v1566, %v1576
      %v1578 = vrot.slane %v1494, 6
      %v1579 = vsel %vm913, %v1567, %v1578
      %v1580 = vrot.slane %v1495, 6
      %v1581 = vsel %vm913, %v1568, %v1580
      %v1582 = vrot.slane %v1496, 6
      %v1583 = vsel %vm913, %v1569, %v1582
      %v1584 = vrot.slane %v1497, 6
      %v1585 = vsel %vm913, %v1570, %v1584
      %v1586 = vrot.slane %v1498, 6
      %v1587 = vsel %vm913, %v1571, %v1586
      %v1596 = vsel %vm1507, %v1383, %v1508
      %v1597 = vsel %vm1507, %v1384, %v1509
      %v1598 = vsel %vm1507, %v1385, %v1510
      %v1599 = vsel %vm1507, %v1386, %v1511
      %v1600 = vsel %vm1507, %v1387, %v1512
      %v1601 = vsel %vm1507, %v1388, %v1513
      %v1602 = vsel %vm1507, %v1389, %v1514
      %v1603 = vsel %vm1507, %v1390, %v1515
      %v1604 = vsel %vm913, %v1517, %v1564
      %v1605 = vsel %vm913, %v1519, %v1565
      %v1606 = vsel %vm913, %v1521, %v1566
      %v1607 = vsel %vm913, %v1523, %v1567
      %v1608 = vsel %vm913, %v1525, %v1568
      %v1609 = vsel %vm913, %v1527, %v1569
      %v1610 = vsel %vm913, %v1529, %v1570
      %v1611 = vsel %vm913, %v1531, %v1571
      %v1612 = vld [vmem:[%s7] sm:$0xff]
      %v1613 = vld [vmem:[%s11] sm:$0xff]
      %1615 = vset.pattern.permute.xlu0 0
      %1616 = vperm.xlu0 %1615, %v1613
      %v1617 = vpop.permute.xlu0 %1616
      %vm1619 = vcmask 220160
      %v1621 = vsel %vm1619, %v1612, 0
      %vm1623 = vcmask 1042432
      %v1624 = vsel %vm1623, %v1573, 0
      %v1626 = vsel %vm1623, %v1575, 0
      %v1628 = vsel %vm1623, %v1577, 0
      %v1630 = vsel %vm1623, %v1579, 0
      %v1632 = vsel %vm1623, %v1581, 0
      %v1634 = vsel %vm1623, %v1583, 0
      %v1636 = vsel %vm1623, %v1585, 0
      %v1638 = vsel %vm1623, %v1587, 0
      %1640 = vmatprep.subr.mxu0 %v1376
      %1641 = vmatpush1.msra.mxu0 %v1375
      %1642 = vmatprep.subr.mxu0 %v1597
      %1643 = vmatpush1.msra.mxu0 %v1596
      %1644 = vmatprep.subr.mxu0 %v1605
      %1645 = vmatpush1.msra.mxu0 %v1604
      %1646 = vmatprep.subr.mxu0 %v1626
      %1647 = vmatpush1.msra.mxu0 %v1624
      %1648 = vmatprep.subr.mxu0 0.0
      %1649 = vmatpush1.msra.mxu0 0.0
      %1650 = vmatprep.subr.mxu0 0.0
      %1651 = vmatpush1.msra.mxu0 0.0
      %1652 = vmatprep.subr.mxu0 0.0
      %1653 = vmatpush1.msra.mxu0 0.0
      %1654 = vmatprep.subr.mxu0 0.0
      %1655 = vmatpush1.msra.mxu0 0.0
      %1656 = vmatprep.subr.mxu0 0.0
      %1657 = vmatpush1.msra.mxu0 0.0
      %1658 = vmatprep.subr.mxu0 0.0
      %1659 = vmatpush1.msra.mxu0 0.0
      %1660 = vmatprep.subr.mxu0 0.0
      %1661 = vmatpush1.msra.mxu0 0.0
      %1662 = vmatprep.subr.mxu0 0.0
      %1663 = vmatpush1.msra.mxu0 0.0
      %1664 = vmatprep.subr.mxu0 0.0
      %1665 = vmatpush1.msra.mxu0 0.0
      %1666 = vmatprep.subr.mxu0 0.0
      %1667 = vmatpush1.msra.mxu0 0.0
      %1668 = vmatprep.subr.mxu0 0.0
      %1669 = vmatpush1.msra.mxu0 0.0
      %1670 = vmatprep.subr.mxu0 0.0
      %1671 = vmatpush1.msra.mxu0 0.0
      %1672 = vmatprep.subr.mxu0 0.0
      %1673 = vmatpush1.msra.mxu0 0.0
      %1674 = vmatprep.subr.mxu0 0.0
      %1675 = vmatpush1.msra.mxu0 0.0
      %1676 = vmatprep.subr.mxu0 0.0
      %1677 = vmatpush1.msra.mxu0 0.0
      %1678 = vmatprep.subr.mxu0 0.0
      %1679 = vmatpush1.msra.mxu0 0.0
      %1680 = vmatprep.subr.mxu0 0.0
      %1681 = vmatpush1.msra.mxu0 0.0
      %1682 = vmatprep.subr.mxu0 0.0
      %1683 = vmatpush1.msra.mxu0 0.0
      %1684 = vmatprep.subr.mxu0 0.0
      %1685 = vmatpush1.msra.mxu0 0.0
      %1686 = vmatprep.subr.mxu0 0.0
      %1687 = vmatpush1.msra.mxu0 0.0
      %1688 = vmatprep.subr.mxu0 0.0
      %1689 = vmatpush1.msra.mxu0 0.0
      %1690 = vmatprep.subr.mxu0 0.0
      %1691 = vmatpush1.msra.mxu0 0.0
      %1692 = vmatprep.subr.mxu0 0.0
      %1693 = vmatpush1.msra.mxu0 0.0
      %1694 = vmatprep.subr.mxu0 0.0
      %1695 = vmatpush1.msra.mxu0 0.0
      %1696 = vmatprep.subr.mxu0 0.0
      %1697 = vmatpush1.msra.mxu0 0.0
      %1698 = vmatprep.subr.mxu0 0.0
      %1699 = vmatpush1.msra.mxu0 0.0
      %1700 = vmatprep.subr.mxu0 0.0
      %1701 = vmatpush1.msra.mxu0 0.0
      %1702 = vmatprep.subr.mxu0 0.0
      %1703 = vmatpush1.msra.mxu0 0.0
      %1704 = vmatprep.mubr.f32.mxu0 0.0
      %1705 = vmatmul.mubr.f32.gmra.mrb[0].mxu0 %v1621
      %v1706 = vpop.f32.mrb[0].mxu0
      %v1707 = vadd.f32 %v1617, %v1706
      %v1708 = vpop.f32.mrb[0].mxu0
      %v1709 = vadd.f32 %v1617, %v1708
      %1710 = vdwg.mxu0
      %1711 = vmatprep.subr.mxu0 %v1378
      %1712 = vmatpush1.msra.mxu0 %v1377
      %1713 = vmatprep.subr.mxu0 %v1599
      %1714 = vmatpush1.msra.mxu0 %v1598
      %1715 = vmatprep.subr.mxu0 %v1607
      %1716 = vmatpush1.msra.mxu0 %v1606
      %1717 = vmatprep.subr.mxu0 %v1630
      %1718 = vmatpush1.msra.mxu0 %v1628
      %1719 = vmatprep.subr.mxu0 0.0
      %1720 = vmatpush1.msra.mxu0 0.0
      %1721 = vmatprep.subr.mxu0 0.0
      %1722 = vmatpush1.msra.mxu0 0.0
      %1723 = vmatprep.subr.mxu0 0.0
      %1724 = vmatpush1.msra.mxu0 0.0
      %1725 = vmatprep.subr.mxu0 0.0
      %1726 = vmatpush1.msra.mxu0 0.0
      %1727 = vmatprep.subr.mxu0 0.0
      %1728 = vmatpush1.msra.mxu0 0.0
      %1729 = vmatprep.subr.mxu0 0.0
      %1730 = vmatpush1.msra.mxu0 0.0
      %1731 = vmatprep.subr.mxu0 0.0
      %1732 = vmatpush1.msra.mxu0 0.0
      %1733 = vmatprep.subr.mxu0 0.0
      %1734 = vmatpush1.msra.mxu0 0.0
      %1735 = vmatprep.subr.mxu0 0.0
      %1736 = vmatpush1.msra.mxu0 0.0
      %1737 = vmatprep.subr.mxu0 0.0
      %1738 = vmatpush1.msra.mxu0 0.0
      %1739 = vmatprep.subr.mxu0 0.0
      %1740 = vmatpush1.msra.mxu0 0.0
      %1741 = vmatprep.subr.mxu0 0.0
      %1742 = vmatpush1.msra.mxu0 0.0
      %1743 = vmatprep.subr.mxu0 0.0
      %1744 = vmatpush1.msra.mxu0 0.0
      %1745 = vmatprep.subr.mxu0 0.0
      %1746 = vmatpush1.msra.mxu0 0.0
      %1747 = vmatprep.subr.mxu0 0.0
      %1748 = vmatpush1.msra.mxu0 0.0
      %1749 = vmatprep.subr.mxu0 0.0
      %1750 = vmatpush1.msra.mxu0 0.0
      %1751 = vmatprep.subr.mxu0 0.0
      %1752 = vmatpush1.msra.mxu0 0.0
      %1753 = vmatprep.subr.mxu0 0.0
      %1754 = vmatpush1.msra.mxu0 0.0
      %1755 = vmatprep.subr.mxu0 0.0
      %1756 = vmatpush1.msra.mxu0 0.0
      %1757 = vmatprep.subr.mxu0 0.0
      %1758 = vmatpush1.msra.mxu0 0.0
      %1759 = vmatprep.subr.mxu0 0.0
      %1760 = vmatpush1.msra.mxu0 0.0
      %1761 = vmatprep.subr.mxu0 0.0
      %1762 = vmatpush1.msra.mxu0 0.0
      %1763 = vmatprep.subr.mxu0 0.0
      %1764 = vmatpush1.msra.mxu0 0.0
      %1765 = vmatprep.subr.mxu0 0.0
      %1766 = vmatpush1.msra.mxu0 0.0
      %1767 = vmatprep.subr.mxu0 0.0
      %1768 = vmatpush1.msra.mxu0 0.0
      %1769 = vmatprep.subr.mxu0 0.0
      %1770 = vmatpush1.msra.mxu0 0.0
      %1771 = vmatprep.subr.mxu0 0.0
      %1772 = vmatpush1.msra.mxu0 0.0
      %1773 = vmatprep.subr.mxu0 0.0
      %1774 = vmatpush1.msra.mxu0 0.0
      %1775 = vmatprep.mubr.f32.mxu0 0.0
      %1776 = vmatmul.mubr.f32.gmra.mrb[0].mxu0 %v1621
      %v1777 = vpop.f32.mrb[0].mxu0
      %v1778 = vadd.f32 %v1617, %v1777
      %v1779 = vpop.f32.mrb[0].mxu0
      %v1780 = vadd.f32 %v1617, %v1779
      %1781 = vdwg.mxu0
      %1782 = vmatprep.subr.mxu0 %v1380
      %1783 = vmatpush1.msra.mxu0 %v1379
      %1784 = vmatprep.subr.mxu0 %v1601
      %1785 = vmatpush1.msra.mxu0 %v1600
      %1786 = vmatprep.subr.mxu0 %v1609
      %1787 = vmatpush1.msra.mxu0 %v1608
      %1788 = vmatprep.subr.mxu0 %v1634
      %1789 = vmatpush1.msra.mxu0 %v1632
      %1790 = vmatprep.subr.mxu0 0.0
      %1791 = vmatpush1.msra.mxu0 0.0
      %1792 = vmatprep.subr.mxu0 0.0
      %1793 = vmatpush1.msra.mxu0 0.0
      %1794 = vmatprep.subr.mxu0 0.0
      %1795 = vmatpush1.msra.mxu0 0.0
      %1796 = vmatprep.subr.mxu0 0.0
      %1797 = vmatpush1.msra.mxu0 0.0
      %1798 = vmatprep.subr.mxu0 0.0
      %1799 = vmatpush1.msra.mxu0 0.0
      %1800 = vmatprep.subr.mxu0 0.0
      %1801 = vmatpush1.msra.mxu0 0.0
      %1802 = vmatprep.subr.mxu0 0.0
      %1803 = vmatpush1.msra.mxu0 0.0
      %1804 = vmatprep.subr.mxu0 0.0
      %1805 = vmatpush1.msra.mxu0 0.0
      %1806 = vmatprep.subr.mxu0 0.0
      %1807 = vmatpush1.msra.mxu0 0.0
      %1808 = vmatprep.subr.mxu0 0.0
      %1809 = vmatpush1.msra.mxu0 0.0
      %1810 = vmatprep.subr.mxu0 0.0
      %1811 = vmatpush1.msra.mxu0 0.0
      %1812 = vmatprep.subr.mxu0 0.0
      %1813 = vmatpush1.msra.mxu0 0.0
      %1814 = vmatprep.subr.mxu0 0.0
      %1815 = vmatpush1.msra.mxu0 0.0
      %1816 = vmatprep.subr.mxu0 0.0
      %1817 = vmatpush1.msra.mxu0 0.0
      %1818 = vmatprep.subr.mxu0 0.0
      %1819 = vmatpush1.msra.mxu0 0.0
      %1820 = vmatprep.subr.mxu0 0.0
      %1821 = vmatpush1.msra.mxu0 0.0
      %1822 = vmatprep.subr.mxu0 0.0
      %1823 = vmatpush1.msra.mxu0 0.0
      %1824 = vmatprep.subr.mxu0 0.0
      %1825 = vmatpush1.msra.mxu0 0.0
      %1826 = vmatprep.subr.mxu0 0.0
      %1827 = vmatpush1.msra.mxu0 0.0
      %1828 = vmatprep.subr.mxu0 0.0
      %1829 = vmatpush1.msra.mxu0 0.0
      %1830 = vmatprep.subr.mxu0 0.0
      %1831 = vmatpush1.msra.mxu0 0.0
      %1832 = vmatprep.subr.mxu0 0.0
      %1833 = vmatpush1.msra.mxu0 0.0
      %1834 = vmatprep.subr.mxu0 0.0
      %1835 = vmatpush1.msra.mxu0 0.0
      %1836 = vmatprep.subr.mxu0 0.0
      %1837 = vmatpush1.msra.mxu0 0.0
      %1838 = vmatprep.subr.mxu0 0.0
      %1839 = vmatpush1.msra.mxu0 0.0
      %1840 = vmatprep.subr.mxu0 0.0
      %1841 = vmatpush1.msra.mxu0 0.0
      %1842 = vmatprep.subr.mxu0 0.0
      %1843 = vmatpush1.msra.mxu0 0.0
      %1844 = vmatprep.subr.mxu0 0.0
      %1845 = vmatpush1.msra.mxu0 0.0
      %1846 = vmatprep.mubr.f32.mxu0 0.0
      %1847 = vmatmul.mubr.f32.gmra.mrb[0].mxu0 %v1621
      %v1848 = vpop.f32.mrb[0].mxu0
      %v1849 = vadd.f32 %v1617, %v1848
      %v1850 = vpop.f32.mrb[0].mxu0
      %v1851 = vadd.f32 %v1617, %v1850
      %1852 = vdwg.mxu0
      %1853 = vmatprep.subr.mxu0 %v1382
      %1854 = vmatpush1.msra.mxu0 %v1381
      %1855 = vmatprep.subr.mxu0 %v1603
      %1856 = vmatpush1.msra.mxu0 %v1602
      %1857 = vmatprep.subr.mxu0 %v1611
      %1858 = vmatpush1.msra.mxu0 %v1610
      %1859 = vmatprep.subr.mxu0 %v1638
      %1860 = vmatpush1.msra.mxu0 %v1636
      %1861 = vmatprep.subr.mxu0 0.0
      %1862 = vmatpush1.msra.mxu0 0.0
      %1863 = vmatprep.subr.mxu0 0.0
      %1864 = vmatpush1.msra.mxu0 0.0
      %1865 = vmatprep.subr.mxu0 0.0
      %1866 = vmatpush1.msra.mxu0 0.0
      %1867 = vmatprep.subr.mxu0 0.0
      %1868 = vmatpush1.msra.mxu0 0.0
      %1869 = vmatprep.subr.mxu0 0.0
      %1870 = vmatpush1.msra.mxu0 0.0
      %1871 = vmatprep.subr.mxu0 0.0
      %1872 = vmatpush1.msra.mxu0 0.0
      %1873 = vmatprep.subr.mxu0 0.0
      %1874 = vmatpush1.msra.mxu0 0.0
      %1875 = vmatprep.subr.mxu0 0.0
      %1876 = vmatpush1.msra.mxu0 0.0
      %1877 = vmatprep.subr.mxu0 0.0
      %1878 = vmatpush1.msra.mxu0 0.0
      %1879 = vmatprep.subr.mxu0 0.0
      %1880 = vmatpush1.msra.mxu0 0.0
      %1881 = vmatprep.subr.mxu0 0.0
      %1882 = vmatpush1.msra.mxu0 0.0
      %1883 = vmatprep.subr.mxu0 0.0
      %1884 = vmatpush1.msra.mxu0 0.0
      %1885 = vmatprep.subr.mxu0 0.0
      %1886 = vmatpush1.msra.mxu0 0.0
      %1887 = vmatprep.subr.mxu0 0.0
      %1888 = vmatpush1.msra.mxu0 0.0
      %1889 = vmatprep.subr.mxu0 0.0
      %1890 = vmatpush1.msra.mxu0 0.0
      %1891 = vmatprep.subr.mxu0 0.0
      %1892 = vmatpush1.msra.mxu0 0.0
      %1893 = vmatprep.subr.mxu0 0.0
      %1894 = vmatpush1.msra.mxu0 0.0
      %1895 = vmatprep.subr.mxu0 0.0
      %1896 = vmatpush1.msra.mxu0 0.0
      %1897 = vmatprep.subr.mxu0 0.0
      %1898 = vmatpush1.msra.mxu0 0.0
      %1899 = vmatprep.subr.mxu0 0.0
      %1900 = vmatpush1.msra.mxu0 0.0
      %1901 = vmatprep.subr.mxu0 0.0
      %1902 = vmatpush1.msra.mxu0 0.0
      %1903 = vmatprep.subr.mxu0 0.0
      %1904 = vmatpush1.msra.mxu0 0.0
      %1905 = vmatprep.subr.mxu0 0.0
      %1906 = vmatpush1.msra.mxu0 0.0
      %1907 = vmatprep.subr.mxu0 0.0
      %1908 = vmatpush1.msra.mxu0 0.0
      %1909 = vmatprep.subr.mxu0 0.0
      %1910 = vmatpush1.msra.mxu0 0.0
      %1911 = vmatprep.subr.mxu0 0.0
      %1912 = vmatpush1.msra.mxu0 0.0
      %1913 = vmatprep.subr.mxu0 0.0
      %1914 = vmatpush1.msra.mxu0 0.0
      %1915 = vmatprep.subr.mxu0 0.0
      %1916 = vmatpush1.msra.mxu0 0.0
      %1917 = vmatprep.mubr.f32.mxu0 0.0
      %1918 = vmatmul.mubr.f32.gmra.mrb[0].mxu0 %v1621
      %v1919 = vpop.f32.mrb[0].mxu0
      %v1920 = vadd.f32 %v1617, %v1919
      %v1921 = vpop.f32.mrb[0].mxu0
      %v1922 = vadd.f32 %v1617, %v1921
      %1923 = vdwg.mxu0
      %1924 = vst [vmem:[%s630] sm:$0xff] %v1707
      %1925 = vst [vmem:[%s630 + $0x8] sm:$0xff] %v1709
      %1926 = vst [vmem:[%s630 + $0x10] sm:$0xff] %v1778
      %1927 = vst [vmem:[%s630 + $0x18] sm:$0xff] %v1780
      %1928 = vst [vmem:[%s630 + $0x20] sm:$0xff] %v1849
      %1929 = vst [vmem:[%s630 + $0x28] sm:$0xff] %v1851
      %1930 = vst [vmem:[%s630 + $0x30] sm:$0xff] %v1920
      %1931 = vst [vmem:[%s630 + $0x38] sm:$0xff] %v1922
      %v1932 = vld [vmem:[%s625] sm:$0xff]
      %v1933 = vld [vmem:[%s625 + $0x8] sm:$0xff]
      %v1934 = vld [vmem:[%s4] sm:$0xf]
      %v1937 = vcombine.high %v1932, %v1932
      %v1938 = vcombine.high %v1933, %v1933
      %v1942 = vlaneseq
      %v1943 = vshrl.u32 %v1942, 7
      %v1944 = vsub.s32 0, %v1943
      %v1945 = vrot.slane %v1934, %v1944
      %v1946 = vlaneseq
      %v1947 = vshrl.u32 %v1946, 7
      %v1948 = vsub.s32 1, %v1947
      %v1949 = vrot.slane %v1934, %v1948
      %v1950 = vlaneseq
      %v1951 = vshrl.u32 %v1950, 7
      %v1952 = vsub.s32 2, %v1951
      %v1953 = vrot.slane %v1934, %v1952
      %v1954 = vlaneseq
      %v1955 = vshrl.u32 %v1954, 7
      %v1956 = vsub.s32 3, %v1955
      %v1957 = vrot.slane %v1934, %v1956
      %v1962 = vsel %vm694, %v1932, %v1945
      %v1963 = vsel %vm694, %v1937, %v1949
      %v1964 = vsel %vm694, %v1933, %v1953
      %v1965 = vsel %vm694, %v1938, %v1957
      %1966 = vrot.lane.b32.xlu0 %v1962, 1
      %v1967 = vpop.permute.xlu0 %1966
      %1968 = vrot.lane.b32.xlu0 %v1963, 1
      %v1969 = vpop.permute.xlu0 %1968
      %1970 = vrot.lane.b32.xlu0 %v1964, 1
      %v1971 = vpop.permute.xlu0 %1970
      %1972 = vrot.lane.b32.xlu0 %v1965, 1
      %v1973 = vpop.permute.xlu0 %1972
      %v1974 = vsel %vm1316, %v1971, %v1973
      %v1975 = vsel %vm1316, %v1969, %v1971
      %v1976 = vsel %vm1316, %v1967, %v1969
      %v1977 = vsel %vm1316, %v1973, %v1967
      %v1978 = vld [vmem:[%s16] sm:$0xf]
      %v1980 = vlaneseq
      %v1981 = vshrl.u32 %v1980, 7
      %v1982 = vsub.s32 0, %v1981
      %v1983 = vrot.slane %v1978, %v1982
      %v1984 = vlaneseq
      %v1985 = vshrl.u32 %v1984, 7
      %v1986 = vsub.s32 1, %v1985
      %v1987 = vrot.slane %v1978, %v1986
      %v1988 = vlaneseq
      %v1989 = vshrl.u32 %v1988, 7
      %v1990 = vsub.s32 2, %v1989
      %v1991 = vrot.slane %v1978, %v1990
      %v1992 = vlaneseq
      %v1993 = vshrl.u32 %v1992, 7
      %v1994 = vsub.s32 3, %v1993
      %v1995 = vrot.slane %v1978, %v1994
      %v2000 = vmul.f32 %v1977, %v1983
      %v2001 = vmul.f32 %v1976, %v1987
      %v2002 = vmul.f32 %v1975, %v1991
      %v2003 = vmul.f32 %v1974, %v1995
      %2004 = vrot.lane.b32.xlu0 %v1962, 127
      %v2005 = vpop.permute.xlu0 %2004
      %2006 = vrot.lane.b32.xlu0 %v1963, 127
      %v2007 = vpop.permute.xlu0 %2006
      %2008 = vrot.lane.b32.xlu0 %v1964, 127
      %v2009 = vpop.permute.xlu0 %2008
      %2010 = vrot.lane.b32.xlu0 %v1965, 127
      %v2011 = vpop.permute.xlu0 %2010
      %v2012 = vsel %vm1423, %v2009, %v2011
      %v2013 = vsel %vm1423, %v2007, %v2009
      %v2014 = vsel %vm1423, %v2005, %v2007
      %v2015 = vsel %vm1423, %v2011, %v2005
      %s2016 = scalar_lea.vmem %s16, 8
      %v2017 = vld [vmem:[%s2016] sm:$0xf]
      %v2019 = vlaneseq
      %v2020 = vshrl.u32 %v2019, 7
      %v2021 = vsub.s32 0, %v2020
      %v2022 = vrot.slane %v2017, %v2021
      %v2023 = vlaneseq
      %v2024 = vshrl.u32 %v2023, 7
      %v2025 = vsub.s32 1, %v2024
      %v2026 = vrot.slane %v2017, %v2025
      %v2027 = vlaneseq
      %v2028 = vshrl.u32 %v2027, 7
      %v2029 = vsub.s32 2, %v2028
      %v2030 = vrot.slane %v2017, %v2029
      %v2031 = vlaneseq
      %v2032 = vshrl.u32 %v2031, 7
      %v2033 = vsub.s32 3, %v2032
      %v2034 = vrot.slane %v2017, %v2033
      %v2039 = vmul.f32 %v2014, %v2022
      %v2040 = vmul.f32 %v2013, %v2026
      %v2041 = vmul.f32 %v2012, %v2030
      %v2042 = vmul.f32 %v2015, %v2034
      %v2047 = vrot.slane %v1962, 3
      %v2048 = vrot.slane %v1963, 3
      %v2049 = vrot.slane %v1964, 3
      %v2050 = vrot.slane %v1965, 3
      %v2059 = vrot.slane %v2039, 6
      %v2060 = vrot.slane %v2040, 6
      %v2061 = vrot.slane %v2041, 6
      %v2062 = vrot.slane %v2042, 6
      %v2067 = vsel %vm904, %v2000, %v2047
      %v2068 = vsel %vm904, %v2001, %v2048
      %v2069 = vsel %vm904, %v2002, %v2049
      %v2070 = vsel %vm904, %v2003, %v2050
      %v2071 = vsel %vm913, %v2047, %v2059
      %v2072 = vsel %vm913, %v2048, %v2060
      %v2073 = vsel %vm913, %v2049, %v2061
      %v2074 = vsel %vm913, %v2050, %v2062
      %v2075 = vld [vmem:[%s8] sm:$0xff]
      %v2076 = vld [vmem:[%s12] sm:$0xff]
      %2078 = vset.pattern.permute.xlu0 0
      %2079 = vperm.xlu0 %2078, %v2076
      %v2080 = vpop.permute.xlu0 %2079
      %v2083 = vsel %vm929, %v2075, 0
      %v2086 = vsel %vm933, %v2071, 0
      %v2089 = vsel %vm933, %v2072, 0
      %v2092 = vsel %vm933, %v2073, 0
      %v2095 = vsel %vm933, %v2074, 0
      %2097 = vmatprep.subr.mxu0 %v2068
      %2098 = vmatpush1.msra.mxu0 %v2067
      %2099 = vmatprep.subr.mxu0 %v2089
      %2100 = vmatpush1.msra.mxu0 %v2086
      %2101 = vmatprep.subr.mxu0 0.0
      %2102 = vmatpush1.msra.mxu0 0.0
      %2103 = vmatprep.subr.mxu0 0.0
      %2104 = vmatpush1.msra.mxu0 0.0
      %2105 = vmatprep.subr.mxu0 0.0
      %2106 = vmatpush1.msra.mxu0 0.0
      %2107 = vmatprep.subr.mxu0 0.0
      %2108 = vmatpush1.msra.mxu0 0.0
      %2109 = vmatprep.subr.mxu0 0.0
      %2110 = vmatpush1.msra.mxu0 0.0
      %2111 = vmatprep.subr.mxu0 0.0
      %2112 = vmatpush1.msra.mxu0 0.0
      %2113 = vmatprep.subr.mxu0 0.0
      %2114 = vmatpush1.msra.mxu0 0.0
      %2115 = vmatprep.subr.mxu0 0.0
      %2116 = vmatpush1.msra.mxu0 0.0
      %2117 = vmatprep.subr.mxu0 0.0
      %2118 = vmatpush1.msra.mxu0 0.0
      %2119 = vmatprep.subr.mxu0 0.0
      %2120 = vmatpush1.msra.mxu0 0.0
      %2121 = vmatprep.subr.mxu0 0.0
      %2122 = vmatpush1.msra.mxu0 0.0
      %2123 = vmatprep.subr.mxu0 0.0
      %2124 = vmatpush1.msra.mxu0 0.0
      %2125 = vmatprep.subr.mxu0 0.0
      %2126 = vmatpush1.msra.mxu0 0.0
      %2127 = vmatprep.subr.mxu0 0.0
      %2128 = vmatpush1.msra.mxu0 0.0
      %2129 = vmatprep.subr.mxu0 0.0
      %2130 = vmatpush1.msra.mxu0 0.0
      %2131 = vmatprep.subr.mxu0 0.0
      %2132 = vmatpush1.msra.mxu0 0.0
      %2133 = vmatprep.subr.mxu0 0.0
      %2134 = vmatpush1.msra.mxu0 0.0
      %2135 = vmatprep.subr.mxu0 0.0
      %2136 = vmatpush1.msra.mxu0 0.0
      %2137 = vmatprep.subr.mxu0 0.0
      %2138 = vmatpush1.msra.mxu0 0.0
      %2139 = vmatprep.subr.mxu0 0.0
      %2140 = vmatpush1.msra.mxu0 0.0
      %2141 = vmatprep.subr.mxu0 0.0
      %2142 = vmatpush1.msra.mxu0 0.0
      %2143 = vmatprep.subr.mxu0 0.0
      %2144 = vmatpush1.msra.mxu0 0.0
      %2145 = vmatprep.subr.mxu0 0.0
      %2146 = vmatpush1.msra.mxu0 0.0
      %2147 = vmatprep.subr.mxu0 0.0
      %2148 = vmatpush1.msra.mxu0 0.0
      %2149 = vmatprep.subr.mxu0 0.0
      %2150 = vmatpush1.msra.mxu0 0.0
      %2151 = vmatprep.subr.mxu0 0.0
      %2152 = vmatpush1.msra.mxu0 0.0
      %2153 = vmatprep.subr.mxu0 0.0
      %2154 = vmatpush1.msra.mxu0 0.0
      %2155 = vmatprep.subr.mxu0 0.0
      %2156 = vmatpush1.msra.mxu0 0.0
      %2157 = vmatprep.subr.mxu0 0.0
      %2158 = vmatpush1.msra.mxu0 0.0
      %2159 = vmatprep.subr.mxu0 0.0
      %2160 = vmatpush1.msra.mxu0 0.0
      %2161 = vmatprep.mubr.f32.mxu0 0.0
      %2162 = vmatmul.mubr.f32.gmra.mrb[0].mxu0 %v2083
      %v2163 = vpop.f32.mrb[0].mxu0
      %v2164 = vadd.f32 %v2080, %v2163
      %v2165 = vpop.f32.mrb[0].mxu0
      %v2166 = vadd.f32 %v2080, %v2165
      %2167 = vdwg.mxu0
      %2168 = vmatprep.subr.mxu0 %v2070
      %2169 = vmatpush1.msra.mxu0 %v2069
      %2170 = vmatprep.subr.mxu0 %v2095
      %2171 = vmatpush1.msra.mxu0 %v2092
      %2172 = vmatprep.subr.mxu0 0.0
      %2173 = vmatpush1.msra.mxu0 0.0
      %2174 = vmatprep.subr.mxu0 0.0
      %2175 = vmatpush1.msra.mxu0 0.0
      %2176 = vmatprep.subr.mxu0 0.0
      %2177 = vmatpush1.msra.mxu0 0.0
      %2178 = vmatprep.subr.mxu0 0.0
      %2179 = vmatpush1.msra.mxu0 0.0
      %2180 = vmatprep.subr.mxu0 0.0
      %2181 = vmatpush1.msra.mxu0 0.0
      %2182 = vmatprep.subr.mxu0 0.0
      %2183 = vmatpush1.msra.mxu0 0.0
      %2184 = vmatprep.subr.mxu0 0.0
      %2185 = vmatpush1.msra.mxu0 0.0
      %2186 = vmatprep.subr.mxu0 0.0
      %2187 = vmatpush1.msra.mxu0 0.0
      %2188 = vmatprep.subr.mxu0 0.0
      %2189 = vmatpush1.msra.mxu0 0.0
      %2190 = vmatprep.subr.mxu0 0.0
      %2191 = vmatpush1.msra.mxu0 0.0
      %2192 = vmatprep.subr.mxu0 0.0
      %2193 = vmatpush1.msra.mxu0 0.0
      %2194 = vmatprep.subr.mxu0 0.0
      %2195 = vmatpush1.msra.mxu0 0.0
      %2196 = vmatprep.subr.mxu0 0.0
      %2197 = vmatpush1.msra.mxu0 0.0
      %2198 = vmatprep.subr.mxu0 0.0
      %2199 = vmatpush1.msra.mxu0 0.0
      %2200 = vmatprep.subr.mxu0 0.0
      %2201 = vmatpush1.msra.mxu0 0.0
      %2202 = vmatprep.subr.mxu0 0.0
      %2203 = vmatpush1.msra.mxu0 0.0
      %2204 = vmatprep.subr.mxu0 0.0
      %2205 = vmatpush1.msra.mxu0 0.0
      %2206 = vmatprep.subr.mxu0 0.0
      %2207 = vmatpush1.msra.mxu0 0.0
      %2208 = vmatprep.subr.mxu0 0.0
      %2209 = vmatpush1.msra.mxu0 0.0
      %2210 = vmatprep.subr.mxu0 0.0
      %2211 = vmatpush1.msra.mxu0 0.0
      %2212 = vmatprep.subr.mxu0 0.0
      %2213 = vmatpush1.msra.mxu0 0.0
      %2214 = vmatprep.subr.mxu0 0.0
      %2215 = vmatpush1.msra.mxu0 0.0
      %2216 = vmatprep.subr.mxu0 0.0
      %2217 = vmatpush1.msra.mxu0 0.0
      %2218 = vmatprep.subr.mxu0 0.0
      %2219 = vmatpush1.msra.mxu0 0.0
      %2220 = vmatprep.subr.mxu0 0.0
      %2221 = vmatpush1.msra.mxu0 0.0
      %2222 = vmatprep.subr.mxu0 0.0
      %2223 = vmatpush1.msra.mxu0 0.0
      %2224 = vmatprep.subr.mxu0 0.0
      %2225 = vmatpush1.msra.mxu0 0.0
      %2226 = vmatprep.subr.mxu0 0.0
      %2227 = vmatpush1.msra.mxu0 0.0
      %2228 = vmatprep.subr.mxu0 0.0
      %2229 = vmatpush1.msra.mxu0 0.0
      %2230 = vmatprep.subr.mxu0 0.0
      %2231 = vmatpush1.msra.mxu0 0.0
      %2232 = vmatprep.mubr.f32.mxu0 0.0
      %2233 = vmatmul.mubr.f32.gmra.mrb[0].mxu0 %v2083
      %v2234 = vpop.f32.mrb[0].mxu0
      %v2235 = vadd.f32 %v2080, %v2234
      %v2236 = vpop.f32.mrb[0].mxu0
      %v2237 = vadd.f32 %v2080, %v2236
      %2238 = vdwg.mxu0
      %v2239 = vld [vmem:[%s5] sm:$0xf]
      %v2241 = vlaneseq
      %v2242 = vshrl.u32 %v2241, 7
      %v2243 = vsub.s32 0, %v2242
      %v2244 = vrot.slane %v2239, %v2243
      %v2245 = vlaneseq
      %v2246 = vshrl.u32 %v2245, 7
      %v2247 = vsub.s32 1, %v2246
      %v2248 = vrot.slane %v2239, %v2247
      %v2249 = vlaneseq
      %v2250 = vshrl.u32 %v2249, 7
      %v2251 = vsub.s32 2, %v2250
      %v2252 = vrot.slane %v2239, %v2251
      %v2253 = vlaneseq
      %v2254 = vshrl.u32 %v2253, 7
      %v2255 = vsub.s32 3, %v2254
      %v2256 = vrot.slane %v2239, %v2255
      %2261 = vrot.lane.b32.xlu0 %v2164, 16
      %v2262 = vpop.permute.xlu0 %2261
      %2263 = vrot.lane.b32.xlu0 %v2244, 16
      %v2264 = vpop.permute.xlu0 %2263
      %2265 = vrot.lane.b32.xlu0 %v2166, 16
      %v2266 = vpop.permute.xlu0 %2265
      %2267 = vrot.lane.b32.xlu0 %v2248, 16
      %v2268 = vpop.permute.xlu0 %2267
      %2269 = vrot.lane.b32.xlu0 %v2235, 16
      %v2270 = vpop.permute.xlu0 %2269
      %2271 = vrot.lane.b32.xlu0 %v2252, 16
      %v2272 = vpop.permute.xlu0 %2271
      %2273 = vrot.lane.b32.xlu0 %v2237, 16
      %v2274 = vpop.permute.xlu0 %2273
      %2275 = vrot.lane.b32.xlu0 %v2256, 16
      %v2276 = vpop.permute.xlu0 %2275
      %vm2277 = vcmp.lt.s32.totalorder %v720, 16
      %v2278 = vsel %vm2277, %v2270, %v2274
      %v2279 = vsel %vm2277, %v2272, %v2276
      %v2280 = vsel %vm2277, %v2266, %v2270
      %v2281 = vsel %vm2277, %v2268, %v2272
      %v2282 = vsel %vm2277, %v2262, %v2266
      %v2283 = vsel %vm2277, %v2264, %v2268
      %v2284 = vsel %vm2277, %v2274, %v2262
      %v2285 = vsel %vm2277, %v2276, %v2264
      %v2286 = vld [vmem:[%s17] sm:$0xf]
      %v2288 = vlaneseq
      %v2289 = vshrl.u32 %v2288, 7
      %v2290 = vsub.s32 0, %v2289
      %v2291 = vrot.slane %v2286, %v2290
      %v2292 = vlaneseq
      %v2293 = vshrl.u32 %v2292, 7
      %v2294 = vsub.s32 1, %v2293
      %v2295 = vrot.slane %v2286, %v2294
      %v2296 = vlaneseq
      %v2297 = vshrl.u32 %v2296, 7
      %v2298 = vsub.s32 2, %v2297
      %v2299 = vrot.slane %v2286, %v2298
      %v2300 = vlaneseq
      %v2301 = vshrl.u32 %v2300, 7
      %v2302 = vsub.s32 3, %v2301
      %v2303 = vrot.slane %v2286, %v2302
      %v2308 = vmul.f32 %v2284, %v2291
      %v2309 = vmul.f32 %v2282, %v2295
      %v2310 = vmul.f32 %v2280, %v2299
      %v2311 = vmul.f32 %v2278, %v2303
      %v2312 = vmul.f32 %v2285, %v2291
      %v2313 = vmul.f32 %v2283, %v2295
      %v2314 = vmul.f32 %v2281, %v2299
      %v2315 = vmul.f32 %v2279, %v2303
      %2316 = vrot.lane.b32.xlu0 %v2164, 112
      %v2317 = vpop.permute.xlu0 %2316
      %2318 = vrot.lane.b32.xlu0 %v2244, 112
      %v2319 = vpop.permute.xlu0 %2318
      %2320 = vrot.lane.b32.xlu0 %v2166, 112
      %v2321 = vpop.permute.xlu0 %2320
      %2322 = vrot.lane.b32.xlu0 %v2248, 112
      %v2323 = vpop.permute.xlu0 %2322
      %2324 = vrot.lane.b32.xlu0 %v2235, 112
      %v2325 = vpop.permute.xlu0 %2324
      %2326 = vrot.lane.b32.xlu0 %v2252, 112
      %v2327 = vpop.permute.xlu0 %2326
      %2328 = vrot.lane.b32.xlu0 %v2237, 112
      %v2329 = vpop.permute.xlu0 %2328
      %2330 = vrot.lane.b32.xlu0 %v2256, 112
      %v2331 = vpop.permute.xlu0 %2330
      %vm2332 = vcmp.lt.s32.totalorder %v720, 112
      %v2333 = vsel %vm2332, %v2325, %v2329
      %v2334 = vsel %vm2332, %v2327, %v2331
      %v2335 = vsel %vm2332, %v2321, %v2325
      %v2336 = vsel %vm2332, %v2323, %v2327
      %v2337 = vsel %vm2332, %v2317, %v2321
      %v2338 = vsel %vm2332, %v2319, %v2323
      %v2339 = vsel %vm2332, %v2329, %v2317
      %v2340 = vsel %vm2332, %v2331, %v2319
      %s2341 = scalar_lea.vmem %s17, 8
      %v2342 = vld [vmem:[%s2341] sm:$0xf]
      %v2344 = vlaneseq
      %v2345 = vshrl.u32 %v2344, 7
      %v2346 = vsub.s32 0, %v2345
      %v2347 = vrot.slane %v2342, %v2346
      %v2348 = vlaneseq
      %v2349 = vshrl.u32 %v2348, 7
      %v2350 = vsub.s32 1, %v2349
      %v2351 = vrot.slane %v2342, %v2350
      %v2352 = vlaneseq
      %v2353 = vshrl.u32 %v2352, 7
      %v2354 = vsub.s32 2, %v2353
      %v2355 = vrot.slane %v2342, %v2354
      %v2356 = vlaneseq
      %v2357 = vshrl.u32 %v2356, 7
      %v2358 = vsub.s32 3, %v2357
      %v2359 = vrot.slane %v2342, %v2358
      %v2364 = vmul.f32 %v2337, %v2347
      %v2365 = vmul.f32 %v2335, %v2351
      %v2366 = vmul.f32 %v2333, %v2355
      %v2367 = vmul.f32 %v2339, %v2359
      %v2368 = vmul.f32 %v2338, %v2347
      %v2369 = vmul.f32 %v2336, %v2351
      %v2370 = vmul.f32 %v2334, %v2355
      %v2371 = vmul.f32 %v2340, %v2359
      %v2376 = vrot.slane %v2164, 7
      %v2377 = vrot.slane %v2166, 7
      %v2378 = vrot.slane %v2235, 7
      %v2379 = vrot.slane %v2237, 7
      %v2380 = vrot.slane %v2244, 7
      %v2381 = vsel %vm1507, %v2376, %v2380
      %v2382 = vrot.slane %v2248, 7
      %v2383 = vsel %vm1507, %v2377, %v2382
      %v2384 = vrot.slane %v2252, 7
      %v2385 = vsel %vm1507, %v2378, %v2384
      %v2386 = vrot.slane %v2256, 7
      %v2387 = vsel %vm1507, %v2379, %v2386
      %v2404 = vrot.slane %v2364, 6
      %v2405 = vrot.slane %v2365, 6
      %v2406 = vrot.slane %v2366, 6
      %v2407 = vrot.slane %v2367, 6
      %v2408 = vrot.slane %v2368, 6
      %v2409 = vsel %vm913, %v2404, %v2408
      %v2410 = vrot.slane %v2369, 6
      %v2411 = vsel %vm913, %v2405, %v2410
      %v2412 = vrot.slane %v2370, 6
      %v2413 = vsel %vm913, %v2406, %v2412
      %v2414 = vrot.slane %v2371, 6
      %v2415 = vsel %vm913, %v2407, %v2414
      %v2420 = vsel %vm1507, %v2312, %v2376
      %v2421 = vsel %vm1507, %v2313, %v2377
      %v2422 = vsel %vm1507, %v2314, %v2378
      %v2423 = vsel %vm1507, %v2315, %v2379
      %v2424 = vsel %vm913, %v2381, %v2404
      %v2425 = vsel %vm913, %v2383, %v2405
      %v2426 = vsel %vm913, %v2385, %v2406
      %v2427 = vsel %vm913, %v2387, %v2407
      %v2428 = vld [vmem:[%s9] sm:$0xff]
      %v2429 = vld [vmem:[%s13] sm:$0xff]
      %2431 = vset.pattern.permute.xlu0 0
      %2432 = vperm.xlu0 %2431, %v2429
      %v2433 = vpop.permute.xlu0 %2432
      %v2436 = vsel %vm1619, %v2428, 0
      %v2438 = vsel %vm1623, %v2409, 0
      %v2440 = vsel %vm1623, %v2411, 0
      %v2442 = vsel %vm1623, %v2413, 0
      %v2444 = vsel %vm1623, %v2415, 0
      %2446 = vmatprep.subr.mxu0 %v2309
      %2447 = vmatpush1.msra.mxu0 %v2308
      %2448 = vmatprep.subr.mxu0 %v2421
      %2449 = vmatpush1.msra.mxu0 %v2420
      %2450 = vmatprep.subr.mxu0 %v2425
      %2451 = vmatpush1.msra.mxu0 %v2424
      %2452 = vmatprep.subr.mxu0 %v2440
      %2453 = vmatpush1.msra.mxu0 %v2438
      %2454 = vmatprep.subr.mxu0 0.0
      %2455 = vmatpush1.msra.mxu0 0.0
      %2456 = vmatprep.subr.mxu0 0.0
      %2457 = vmatpush1.msra.mxu0 0.0
      %2458 = vmatprep.subr.mxu0 0.0
      %2459 = vmatpush1.msra.mxu0 0.0
      %2460 = vmatprep.subr.mxu0 0.0
      %2461 = vmatpush1.msra.mxu0 0.0
      %2462 = vmatprep.subr.mxu0 0.0
      %2463 = vmatpush1.msra.mxu0 0.0
      %2464 = vmatprep.subr.mxu0 0.0
      %2465 = vmatpush1.msra.mxu0 0.0
      %2466 = vmatprep.subr.mxu0 0.0
      %2467 = vmatpush1.msra.mxu0 0.0
      %2468 = vmatprep.subr.mxu0 0.0
      %2469 = vmatpush1.msra.mxu0 0.0
      %2470 = vmatprep.subr.mxu0 0.0
      %2471 = vmatpush1.msra.mxu0 0.0
      %2472 = vmatprep.subr.mxu0 0.0
      %2473 = vmatpush1.msra.mxu0 0.0
      %2474 = vmatprep.subr.mxu0 0.0
      %2475 = vmatpush1.msra.mxu0 0.0
      %2476 = vmatprep.subr.mxu0 0.0
      %2477 = vmatpush1.msra.mxu0 0.0
      %2478 = vmatprep.subr.mxu0 0.0
      %2479 = vmatpush1.msra.mxu0 0.0
      %2480 = vmatprep.subr.mxu0 0.0
      %2481 = vmatpush1.msra.mxu0 0.0
      %2482 = vmatprep.subr.mxu0 0.0
      %2483 = vmatpush1.msra.mxu0 0.0
      %2484 = vmatprep.subr.mxu0 0.0
      %2485 = vmatpush1.msra.mxu0 0.0
      %2486 = vmatprep.subr.mxu0 0.0
      %2487 = vmatpush1.msra.mxu0 0.0
      %2488 = vmatprep.subr.mxu0 0.0
      %2489 = vmatpush1.msra.mxu0 0.0
      %2490 = vmatprep.subr.mxu0 0.0
      %2491 = vmatpush1.msra.mxu0 0.0
      %2492 = vmatprep.subr.mxu0 0.0
      %2493 = vmatpush1.msra.mxu0 0.0
      %2494 = vmatprep.subr.mxu0 0.0
      %2495 = vmatpush1.msra.mxu0 0.0
      %2496 = vmatprep.subr.mxu0 0.0
      %2497 = vmatpush1.msra.mxu0 0.0
      %2498 = vmatprep.subr.mxu0 0.0
      %2499 = vmatpush1.msra.mxu0 0.0
      %2500 = vmatprep.subr.mxu0 0.0
      %2501 = vmatpush1.msra.mxu0 0.0
      %2502 = vmatprep.subr.mxu0 0.0
      %2503 = vmatpush1.msra.mxu0 0.0
      %2504 = vmatprep.subr.mxu0 0.0
      %2505 = vmatpush1.msra.mxu0 0.0
      %2506 = vmatprep.subr.mxu0 0.0
      %2507 = vmatpush1.msra.mxu0 0.0
      %2508 = vmatprep.subr.mxu0 0.0
      %2509 = vmatpush1.msra.mxu0 0.0
      %2510 = vmatprep.mubr.f32.mxu0 0.0
      %2511 = vmatmul.mubr.f32.gmra.mrb[0].mxu0 %v2436
      %v2512 = vpop.f32.mrb[0].mxu0
      %v2513 = vadd.f32 %v2433, %v2512
      %v2514 = vpop.f32.mrb[0].mxu0
      %v2515 = vadd.f32 %v2433, %v2514
      %2516 = vdwg.mxu0
      %2517 = vmatprep.subr.mxu0 %v2311
      %2518 = vmatpush1.msra.mxu0 %v2310
      %2519 = vmatprep.subr.mxu0 %v2423
      %2520 = vmatpush1.msra.mxu0 %v2422
      %2521 = vmatprep.subr.mxu0 %v2427
      %2522 = vmatpush1.msra.mxu0 %v2426
      %2523 = vmatprep.subr.mxu0 %v2444
      %2524 = vmatpush1.msra.mxu0 %v2442
      %2525 = vmatprep.subr.mxu0 0.0
      %2526 = vmatpush1.msra.mxu0 0.0
      %2527 = vmatprep.subr.mxu0 0.0
      %2528 = vmatpush1.msra.mxu0 0.0
      %2529 = vmatprep.subr.mxu0 0.0
      %2530 = vmatpush1.msra.mxu0 0.0
      %2531 = vmatprep.subr.mxu0 0.0
      %2532 = vmatpush1.msra.mxu0 0.0
      %2533 = vmatprep.subr.mxu0 0.0
      %2534 = vmatpush1.msra.mxu0 0.0
      %2535 = vmatprep.subr.mxu0 0.0
      %2536 = vmatpush1.msra.mxu0 0.0
      %2537 = vmatprep.subr.mxu0 0.0
      %2538 = vmatpush1.msra.mxu0 0.0
      %2539 = vmatprep.subr.mxu0 0.0
      %2540 = vmatpush1.msra.mxu0 0.0
      %2541 = vmatprep.subr.mxu0 0.0
      %2542 = vmatpush1.msra.mxu0 0.0
      %2543 = vmatprep.subr.mxu0 0.0
      %2544 = vmatpush1.msra.mxu0 0.0
      %2545 = vmatprep.subr.mxu0 0.0
      %2546 = vmatpush1.msra.mxu0 0.0
      %2547 = vmatprep.subr.mxu0 0.0
      %2548 = vmatpush1.msra.mxu0 0.0
      %2549 = vmatprep.subr.mxu0 0.0
      %2550 = vmatpush1.msra.mxu0 0.0
      %2551 = vmatprep.subr.mxu0 0.0
      %2552 = vmatpush1.msra.mxu0 0.0
      %2553 = vmatprep.subr.mxu0 0.0
      %2554 = vmatpush1.msra.mxu0 0.0
      %2555 = vmatprep.subr.mxu0 0.0
      %2556 = vmatpush1.msra.mxu0 0.0
      %2557 = vmatprep.subr.mxu0 0.0
      %2558 = vmatpush1.msra.mxu0 0.0
      %2559 = vmatprep.subr.mxu0 0.0
      %2560 = vmatpush1.msra.mxu0 0.0
      %2561 = vmatprep.subr.mxu0 0.0
      %2562 = vmatpush1.msra.mxu0 0.0
      %2563 = vmatprep.subr.mxu0 0.0
      %2564 = vmatpush1.msra.mxu0 0.0
      %2565 = vmatprep.subr.mxu0 0.0
      %2566 = vmatpush1.msra.mxu0 0.0
      %2567 = vmatprep.subr.mxu0 0.0
      %2568 = vmatpush1.msra.mxu0 0.0
      %2569 = vmatprep.subr.mxu0 0.0
      %2570 = vmatpush1.msra.mxu0 0.0
      %2571 = vmatprep.subr.mxu0 0.0
      %2572 = vmatpush1.msra.mxu0 0.0
      %2573 = vmatprep.subr.mxu0 0.0
      %2574 = vmatpush1.msra.mxu0 0.0
      %2575 = vmatprep.subr.mxu0 0.0
      %2576 = vmatpush1.msra.mxu0 0.0
      %2577 = vmatprep.subr.mxu0 0.0
      %2578 = vmatpush1.msra.mxu0 0.0
      %2579 = vmatprep.subr.mxu0 0.0
      %2580 = vmatpush1.msra.mxu0 0.0
      %2581 = vmatprep.mubr.f32.mxu0 0.0
      %2582 = vmatmul.mubr.f32.gmra.mrb[0].mxu0 %v2436
      %v2583 = vpop.f32.mrb[0].mxu0
      %v2584 = vadd.f32 %v2433, %v2583
      %v2585 = vpop.f32.mrb[0].mxu0
      %v2586 = vadd.f32 %v2433, %v2585
      %2587 = vdwg.mxu0
      %2588 = vst [vmem:[%s635] sm:$0xff] %v2513
      %2589 = vst [vmem:[%s635 + $0x8] sm:$0xff] %v2515
      %2590 = vst [vmem:[%s635 + $0x10] sm:$0xff] %v2584
      %2591 = vst [vmem:[%s635 + $0x18] sm:$0xff] %v2586
      %p2592 = scmp.lt.s32.totalorder %s31, 1
      %s2593 = scalar_select %p2592, %s31, 1
      %s2594 = smul.addr %s2593, 8
      %s2595 = smul.addr %s2594, 8
      %s2596 = scalar_lea.vmem %s18, %s2595
      %p2597 = scmp.lt.s32.totalorder %s31, 1
      %s2598 = scalar_select %p2597, %s31, 1
      %s2599 = smul.addr %s2598, 4
      %s2600 = smul.addr %s2599, 8
      %s2601 = scalar_lea.vmem %s19, %s2600
      // Predicated region
      $region93: #{ac_conv_up_forward.1} parent=91 // pred_check
        %p2602 = pneg %p437
      $region94: #{ac_conv_up_forward.1} parent=91 // pred_check_branch
        %2604 = sbr.rel (%p2602) target = $region96
      $region95: #{ac_conv_up_forward.1} parent=91 // pred_region
        _
      $region96: #{ac_conv_up_forward.1} parent=91 // pred_fallthru
        _
      // Predicated region
      $region97: #{ac_conv_up_forward.1} parent=91 // pred_check
        %p2605 = pneg %p463
      $region98: #{ac_conv_up_forward.1} parent=91 // pred_check_branch
        %2607 = sbr.rel (%p2605) target = $region100
      $region99: #{ac_conv_up_forward.1} parent=91 // pred_region
        _
      $region100: #{ac_conv_up_forward.1} parent=91 // pred_fallthru
        _
    $region92: #{ac_conv_up_forward.1} parent=5 // pred_fallthru
      _
    %p2608 = scmp.le.s32.totalorder 2, %s26
    // Predicated region
    $region101: #{ac_conv_up_forward.1} parent=5 // pred_check
      %p2609 = pneg %p2608
    $region102: #{ac_conv_up_forward.1} parent=5 // pred_check_branch
      %2611 = sbr.rel (%p2609) target = $region104
    $region103: #{ac_conv_up_forward.1} parent=5 // pred_region
      %s2612 = ssub.s32 %s26, 2
      // Predicated region
      $region105: #{ac_conv_up_forward.1} parent=103 // pred_check
        %p2613 = pneg %p443
      $region106: #{ac_conv_up_forward.1} parent=103 // pred_check_branch
        %2615 = sbr.rel (%p2613) target = $region108
      $region107: #{ac_conv_up_forward.1} parent=103 // pred_region
        %p2616 = scmp.lt.s32.totalorder %s32, 1
        %s2617 = scalar_select %p2616, %s32, 1
        %s2618 = smul.addr %s2617, 8
        %s2619 = smul.addr %s2618, 8
        %s2620 = scalar_lea.vmem %s18, %s2619
      $region108: #{ac_conv_up_forward.1} parent=103 // pred_fallthru
        _
      // Predicated region
      $region109: #{ac_conv_up_forward.1} parent=103 // pred_check
        %p2621 = pneg %p469
      $region110: #{ac_conv_up_forward.1} parent=103 // pred_check_branch
        %2623 = sbr.rel (%p2621) target = $region112
      $region111: #{ac_conv_up_forward.1} parent=103 // pred_region
        %p2624 = scmp.lt.s32.totalorder %s32, 1
        %s2625 = scalar_select %p2624, %s32, 1
        %s2626 = smul.addr %s2625, 4
        %s2627 = smul.addr %s2626, 8
        %s2628 = scalar_lea.vmem %s19, %s2627
      $region112: #{ac_conv_up_forward.1} parent=103 // pred_fallthru
        _
    $region104: #{ac_conv_up_forward.1} parent=5 // pred_fallthru
      _
  $region6: #{ac_conv_up_forward.1} parent=0 // loop_footer
    %s30 = sadd.s32 1, %s26
  $region7: #{ac_conv_up_forward.1} parent=0 // loop_footer_branch
    %25 = sbr.rel target = $region3
  $region8: #{ac_conv_up_forward.1} parent=0 // loop_exit
    _

</llo_original>
